<compile_context>
chip_gen: v7x
topology: tpu7x:2x2x1
jax: 0.10.0
libtpu: 0.0.40
codegen_flags: <defaults>
</compile_context>

<pallas_src>
import functools

import jax
import jax.numpy as jnp
from jax.experimental import pallas as pl
from jax.experimental.pallas import tpu as pltpu


# ----------------------------------------------------------------------------
# Pallas kernel: whole forward pass in one invocation.
# ----------------------------------------------------------------------------
def _rec_sr_kernel(x_ref,        # (T, B, D)   full state sequence
                   wenc_ref,     # (D, E)
                   benc_ref,     # (1, E)
                   wi_ref,       # (E, 3H)     GRU input weights  [r | z | n] along lanes
                   wh_ref,       # (H, 3H)     GRU hidden weights [r | z | n] along lanes
                   bi_ref,       # (1, 3H)     [b_ir+b_hr | b_iz+b_hz | b_in]
                   bhn_ref,      # (1, H)      b_hn (n-gate hidden bias, stays inside r*(...))
                   wsre_ref,     # (E, A*S)    SR head, encoder part
                   wsrh_ref,     # (H, A*S)    SR head, hidden part
                   bsr_ref,      # (1, A*S)
                   hidden_ref,   # out: (T, B, H)
                   psi_ref,      # out: (B, A*S)
                   enc_scr):     # VMEM scratch (T, B, E)
    T, B, D = x_ref.shape
    E = wenc_ref.shape[1]
    H = wh_ref.shape[0]

    # --- hoisted state encoder: one matmul over all T*B rows + ReLU --------
    x_all = x_ref[...].reshape(T * B, D)                       # layout-preserving
    enc_all = jnp.dot(x_all, wenc_ref[...], preferred_element_type=jnp.float32)
    enc_all = jnp.maximum(enc_all + benc_ref[...], 0.0)        # (T*B, E)
    enc_scr[...] = enc_all.reshape(T, B, E)

    # --- hoist weight loads / bias broadcasts out of the time loop ---------
    wi = wi_ref[...]                                           # (E, 3H)
    wh = wh_ref[...]                                           # (H, 3H)
    bi = jnp.broadcast_to(bi_ref[...], (B, 3 * H))             # (B, 3H)
    bhn = jnp.broadcast_to(bhn_ref[...], (B, H))               # (B, H)

    # --- recurrence: 2 matmuls per step, h carried in vregs -----------------
    def step(t, h):
        enc_t = enc_scr[t]                                     # (B, E)
        gi = jnp.dot(enc_t, wi, preferred_element_type=jnp.float32) + bi   # (B, 3H)
        gh = jnp.dot(h, wh, preferred_element_type=jnp.float32)            # (B, 3H)
        r = jax.nn.sigmoid(gi[:, 0:H] + gh[:, 0:H])
        z = jax.nn.sigmoid(gi[:, H:2 * H] + gh[:, H:2 * H])
        n = jnp.tanh(gi[:, 2 * H:3 * H] + r * (gh[:, 2 * H:3 * H] + bhn))
        h_new = (1.0 - z) * n + z * h                          # (B, H)
        hidden_ref[t] = h_new.astype(hidden_ref.dtype)         # VMEM store; HBM writeback once
        return h_new

    h_last = jax.lax.fori_loop(0, T, step, jnp.zeros((B, H), jnp.float32),
                               unroll=True)

    # --- SR head on the final step (last_step=True); no in-kernel concat ---
    enc_last = enc_scr[T - 1]                                  # (B, E)
    psi = jnp.dot(enc_last, wsre_ref[...], preferred_element_type=jnp.float32)
    psi = psi + jnp.dot(h_last, wsrh_ref[...], preferred_element_type=jnp.float32)
    psi = psi + bsr_ref[...]
    psi_ref[...] = psi.astype(psi_ref.dtype)


# ----------------------------------------------------------------------------
# Wrapper
# ----------------------------------------------------------------------------
def recurrent_sr_forward(x, params, num_actions, num_states):
    """x: (T, B, state_dim) float32. Returns (psi, hidden) like module.forward."""
    T, B, D = x.shape
    E = params["w_enc"].shape[1]
    H = params["w_h"].shape[2]
    AS = params["w_sr"].shape[1]
    assert AS == num_actions * num_states

    # --- re-layout params: fused GRU gates, folded biases, split SR head ----
    w_i3 = jnp.transpose(params["w_i"], (1, 0, 2)).reshape(E, 3 * H)   # (E, 3H)
    w_h3 = jnp.transpose(params["w_h"], (1, 0, 2)).reshape(H, 3 * H)   # (H, 3H)
    b_i3 = jnp.concatenate(
        [params["b_i"][0] + params["b_h"][0],    # r gate: b_ir + b_hr
         params["b_i"][1] + params["b_h"][1],    # z gate: b_iz + b_hz
         params["b_i"][2]],                      # n gate: b_in only
        axis=-1)                                                       # (1, 3H)
    b_hn = params["b_h"][2]                                            # (1, H)
    w_sr_e = params["w_sr"][:E]                                        # (E, AS)
    w_sr_h = params["w_sr"][E:]                                        # (H, AS)

    def full_spec(shape):
        nd = len(shape)
        return pl.BlockSpec(shape, lambda i, _nd=nd: (0,) * _nd)

    hidden, psi = pl.pallas_call(
        _rec_sr_kernel,
        out_shape=(
            jax.ShapeDtypeStruct((T, B, H), jnp.float32),   # hidden stack
            jax.ShapeDtypeStruct((B, AS), jnp.float32),     # psi (last step)
        ),
        grid_spec=pltpu.PrefetchScalarGridSpec(
            num_scalar_prefetch=0,
            grid=(1,),                                      # single invocation
            in_specs=[
                full_spec((T, B, D)),        # x (whole sequence resident)
                full_spec((D, E)),           # w_enc
                full_spec((1, E)),           # b_enc
                full_spec((E, 3 * H)),       # w_i fused
                full_spec((H, 3 * H)),       # w_h fused
                full_spec((1, 3 * H)),       # folded gate biases
                full_spec((1, H)),           # n-gate hidden bias
                full_spec((E, AS)),          # w_sr (encoder rows)
                full_spec((H, AS)),          # w_sr (hidden rows)
                full_spec((1, AS)),          # b_sr
            ],
            out_specs=[
                full_spec((T, B, H)),        # hidden
                full_spec((B, AS)),          # psi
            ],
            scratch_shapes=[pltpu.VMEM((T, B, E), jnp.float32)],
        ),
        compiler_params=pltpu.CompilerParams(
            dimension_semantics=("arbitrary",),
        ),
    )(
        x,
        params["w_enc"], params["b_enc"],
        w_i3, w_h3, b_i3, b_hn,
        w_sr_e, w_sr_h, params["b_sr"],
    )

    psi = psi.reshape(1, B, num_actions, num_states)
    return psi, hidden


# ----------------------------------------------------------------------------
# Pure-JAX reference (mirrors the PyTorch forward) for correctness checking.
# ----------------------------------------------------------------------------
def reference_forward(x, params, num_actions, num_states):
    enc = jnp.maximum(jnp.einsum("tbd,de->tbe", x, params["w_enc"]) + params["b_enc"][0], 0.0)
    T, B, _ = enc.shape
    H = params["w_h"].shape[2]

    def cell(h, s):
        gi = jnp.einsum("be,geh->gbh", s, params["w_i"]) + params["b_i"]
        gh = jnp.einsum("bh,ghk->gbk", h, params["w_h"]) + params["b_h"]
        r = jax.nn.sigmoid(gi[0] + gh[0])
        z = jax.nn.sigmoid(gi[1] + gh[1])
        n = jnp.tanh(gi[2] + r * gh[2])
        h_new = (1.0 - z) * n + z * h
        return h_new, h_new

    h0 = jnp.zeros((B, H), jnp.float32)
    _, hidden = jax.lax.scan(cell, h0, enc)
    feat = jnp.concatenate([enc[-1:], hidden[-1:]], axis=-1)      # (1, B, E+H)
    psi = jnp.einsum("tbf,fo->tbo", feat, params["w_sr"]) + params["b_sr"][0]
    psi = psi.reshape(1, B, num_actions, num_states)
    return psi, hidden


# ----------------------------------------------------------------------------
# Main
# ----------------------------------------------------------------------------
if __name__ == "__main__":
    # Small shapes consistent with the module's forward.
    T, B = 8, 8            # seq len, batch
    state_dim = 16         # state_dim
    encoded_dim = 32       # encoded_dim
    hidden_dim = 32        # transition_net.hidden_size
    num_actions = 4
    num_states = 6
    AS = num_actions * num_states

    key = jax.random.PRNGKey(0)
    ks = jax.random.split(key, 10)

    def init(k, shape, scale=0.1):
        return (scale * jax.random.normal(k, shape)).astype(jnp.float32)

    params = {
        "w_enc": init(ks[0], (state_dim, encoded_dim)),
        "b_enc": init(ks[1], (1, encoded_dim)),
        "w_i":   init(ks[2], (3, encoded_dim, hidden_dim)),
        "w_h":   init(ks[3], (3, hidden_dim, hidden_dim)),
        "b_i":   init(ks[4], (3, 1, hidden_dim)),
        "b_h":   init(ks[5], (3, 1, hidden_dim)),
        "w_sr":  init(ks[6], (encoded_dim + hidden_dim, AS)),
        "b_sr":  init(ks[7], (1, AS)),
    }

    # x in the module is a tuple; state = x[0] with shape (seq, batch, state_dim).
    state = jax.random.normal(ks[8], (T, B, state_dim), dtype=jnp.float32)

    fwd = jax.jit(functools.partial(recurrent_sr_forward,
                                    num_actions=num_actions, num_states=num_states))
    psi, hidden = fwd(state, params)
    jax.block_until_ready((psi, hidden))

    psi_ref, hidden_ref = reference_forward(state, params, num_actions, num_states)

    assert psi.shape == (1, B, num_actions, num_states)
    assert hidden.shape == (T, B, hidden_dim)
    assert jnp.allclose(hidden, hidden_ref, rtol=1e-4, atol=1e-4)
    assert jnp.allclose(psi, psi_ref, rtol=1e-4, atol=1e-4)

    print("KERNEL_OK")
</pallas_src>

<mosaic_0001>
module attributes {stable_mosaic.version = 11 : i64} {
  func.func @_rec_sr_kernel(%arg0: i32, %arg1: memref<8x8x16xf32, #tpu.memory_space<vmem>>, %arg2: memref<16x32xf32, #tpu.memory_space<vmem>>, %arg3: memref<1x32xf32, #tpu.memory_space<vmem>>, %arg4: memref<32x96xf32, #tpu.memory_space<vmem>>, %arg5: memref<32x96xf32, #tpu.memory_space<vmem>>, %arg6: memref<1x96xf32, #tpu.memory_space<vmem>>, %arg7: memref<1x32xf32, #tpu.memory_space<vmem>>, %arg8: memref<32x24xf32, #tpu.memory_space<vmem>>, %arg9: memref<32x24xf32, #tpu.memory_space<vmem>>, %arg10: memref<1x24xf32, #tpu.memory_space<vmem>>, %arg11: memref<8x8x32xf32, #tpu.memory_space<vmem>>, %arg12: memref<8x24xf32, #tpu.memory_space<vmem>>, %arg13: memref<8x8x32xf32, #tpu.memory_space<vmem>>) attributes {dimension_semantics = [#tpu.dimension_semantics<arbitrary>], iteration_bounds = array<i64: 1>, scalar_prefetch = 0 : i64, scratch_operands = 1 : i64, tpu.core_type = #tpu.core_type<tc>, window_params = [{pipeline_mode = #tpu.pipeline_mode<synchronous>, transform_indices = @transform_0, window_bounds = array<i64: 8, 8, 16>}, {pipeline_mode = #tpu.pipeline_mode<synchronous>, transform_indices = @transform_1, window_bounds = array<i64: 16, 32>}, {pipeline_mode = #tpu.pipeline_mode<synchronous>, transform_indices = @transform_2, window_bounds = array<i64: 1, 32>}, {pipeline_mode = #tpu.pipeline_mode<synchronous>, transform_indices = @transform_3, window_bounds = array<i64: 32, 96>}, {pipeline_mode = #tpu.pipeline_mode<synchronous>, transform_indices = @transform_4, window_bounds = array<i64: 32, 96>}, {pipeline_mode = #tpu.pipeline_mode<synchronous>, transform_indices = @transform_5, window_bounds = array<i64: 1, 96>}, {pipeline_mode = #tpu.pipeline_mode<synchronous>, transform_indices = @transform_6, window_bounds = array<i64: 1, 32>}, {pipeline_mode = #tpu.pipeline_mode<synchronous>, transform_indices = @transform_7, window_bounds = array<i64: 32, 24>}, {pipeline_mode = #tpu.pipeline_mode<synchronous>, transform_indices = @transform_8, window_bounds = array<i64: 32, 24>}, {pipeline_mode = #tpu.pipeline_mode<synchronous>, transform_indices = @transform_9, window_bounds = array<i64: 1, 24>}, {pipeline_mode = #tpu.pipeline_mode<synchronous>, transform_indices = @transform_10, window_bounds = array<i64: 8, 8, 32>}, {pipeline_mode = #tpu.pipeline_mode<synchronous>, transform_indices = @transform_11, window_bounds = array<i64: 8, 24>}]} {
    %c0 = arith.constant 0 : index
    %c0_0 = arith.constant 0 : index
    %c0_1 = arith.constant 0 : index
    %0 = vector.load %arg1[%c0, %c0_0, %c0_1] : memref<8x8x16xf32, #tpu.memory_space<vmem>>, vector<8x8x16xf32>
    %1 = vector.shape_cast %0 : vector<8x8x16xf32> to vector<64x16xf32>
    %c0_2 = arith.constant 0 : index
    %c0_3 = arith.constant 0 : index
    %2 = vector.load %arg2[%c0_2, %c0_3] : memref<16x32xf32, #tpu.memory_space<vmem>>, vector<16x32xf32>
    %cst = arith.constant dense<0.000000e+00> : vector<64x32xf32>
    %3 = tpu.matmul %1, %2, %cst {dimension_numbers = #tpu.dot_dimension_numbers<[1], [0], [0], [1], [0, 0, 1, 1], [], []>} : vector<64x16xf32>, vector<16x32xf32>, vector<64x32xf32> -> vector<64x32xf32>
    %c0_4 = arith.constant 0 : index
    %c0_5 = arith.constant 0 : index
    %4 = vector.load %arg3[%c0_4, %c0_5] : memref<1x32xf32, #tpu.memory_space<vmem>>, vector<1x32xf32>
    %5 = vector.broadcast %4 : vector<1x32xf32> to vector<64x32xf32>
    %6 = arith.addf %3, %5 : vector<64x32xf32>
    %cst_6 = arith.constant 0.000000e+00 : f32
    %7 = vector.broadcast %cst_6 : f32 to vector<64x32xf32>
    %8 = arith.maximumf %6, %7 : vector<64x32xf32>
    %9 = vector.shape_cast %8 : vector<64x32xf32> to vector<8x8x32xf32>
    %c0_7 = arith.constant 0 : index
    %c0_8 = arith.constant 0 : index
    %c0_9 = arith.constant 0 : index
    %10 = vector.load %arg13[%c0_7, %c0_8, %c0_9] : memref<8x8x32xf32, #tpu.memory_space<vmem>>, vector<8x8x32xf32>
    tpu.vector_store %arg13[%c0_7, %c0_8, %c0_9], %9 {strides = array<i32>} : memref<8x8x32xf32, #tpu.memory_space<vmem>>, vector<8x8x32xf32>,
    %c0_10 = arith.constant 0 : index
    %c0_11 = arith.constant 0 : index
    %11 = vector.load %arg4[%c0_10, %c0_11] : memref<32x96xf32, #tpu.memory_space<vmem>>, vector<32x96xf32>
    %c0_12 = arith.constant 0 : index
    %c0_13 = arith.constant 0 : index
    %12 = vector.load %arg5[%c0_12, %c0_13] : memref<32x96xf32, #tpu.memory_space<vmem>>, vector<32x96xf32>
    %c0_14 = arith.constant 0 : index
    %c0_15 = arith.constant 0 : index
    %13 = vector.load %arg6[%c0_14, %c0_15] : memref<1x96xf32, #tpu.memory_space<vmem>>, vector<1x96xf32>
    %14 = vector.shape_cast %13 : vector<1x96xf32> to vector<1x96xf32>
    %15 = vector.broadcast %14 : vector<1x96xf32> to vector<8x96xf32>
    %c0_16 = arith.constant 0 : index
    %c0_17 = arith.constant 0 : index
    %16 = vector.load %arg7[%c0_16, %c0_17] : memref<1x32xf32, #tpu.memory_space<vmem>>, vector<1x32xf32>
    %17 = vector.shape_cast %16 : vector<1x32xf32> to vector<1x32xf32>
    %18 = vector.broadcast %17 : vector<1x32xf32> to vector<8x32xf32>
    %cst_18 = arith.constant 0.000000e+00 : f32
    %19 = vector.broadcast %cst_18 : f32 to vector<8x32xf32>
    %c0_i32 = arith.constant 0 : i32
    %20 = arith.index_cast %c0_i32 : i32 to index
    %c0_19 = arith.constant 0 : index
    %c0_20 = arith.constant 0 : index
    %21 = vector.load %arg13[%20, %c0_19, %c0_20] : memref<8x8x32xf32, #tpu.memory_space<vmem>>, vector<1x8x32xf32>
    %22 = vector.shape_cast %21 : vector<1x8x32xf32> to vector<8x32xf32>
    %cst_21 = arith.constant dense<0.000000e+00> : vector<8x96xf32>
    %23 = tpu.matmul %22, %11, %cst_21 {dimension_numbers = #tpu.dot_dimension_numbers<[1], [0], [0], [1], [0, 0, 1, 1], [], []>} : vector<8x32xf32>, vector<32x96xf32>, vector<8x96xf32> -> vector<8x96xf32>
    %24 = arith.addf %23, %15 : vector<8x96xf32>
    %cst_22 = arith.constant dense<0.000000e+00> : vector<8x96xf32>
    %25 = tpu.matmul %19, %12, %cst_22 {dimension_numbers = #tpu.dot_dimension_numbers<[1], [0], [0], [1], [0, 0, 1, 1], [], []>} : vector<8x32xf32>, vector<32x96xf32>, vector<8x96xf32> -> vector<8x96xf32>
    %26 = vector.extract_strided_slice %24 {offsets = [0, 0], sizes = [8, 32], strides = [1, 1]} : vector<8x96xf32> to vector<8x32xf32>
    %27 = vector.extract_strided_slice %25 {offsets = [0, 0], sizes = [8, 32], strides = [1, 1]} : vector<8x96xf32> to vector<8x32xf32>
    %28 = arith.addf %26, %27 : vector<8x32xf32>
    %29 = arith.negf %28 : vector<8x32xf32>
    %30 = math.exp %29 : vector<8x32xf32>
    %cst_23 = arith.constant 1.000000e+00 : f32
    %31 = vector.broadcast %cst_23 : f32 to vector<8x32xf32>
    %32 = arith.addf %31, %30 : vector<8x32xf32>
    %33 = arith.divf %31, %32 : vector<8x32xf32>
    %34 = vector.extract_strided_slice %24 {offsets = [0, 32], sizes = [8, 32], strides = [1, 1]} : vector<8x96xf32> to vector<8x32xf32>
    %35 = vector.extract_strided_slice %25 {offsets = [0, 32], sizes = [8, 32], strides = [1, 1]} : vector<8x96xf32> to vector<8x32xf32>
    %36 = arith.addf %34, %35 : vector<8x32xf32>
    %37 = arith.negf %36 : vector<8x32xf32>
    %38 = math.exp %37 : vector<8x32xf32>
    %cst_24 = arith.constant 1.000000e+00 : f32
    %39 = vector.broadcast %cst_24 : f32 to vector<8x32xf32>
    %40 = arith.addf %39, %38 : vector<8x32xf32>
    %41 = arith.divf %39, %40 : vector<8x32xf32>
    %42 = vector.extract_strided_slice %24 {offsets = [0, 64], sizes = [8, 32], strides = [1, 1]} : vector<8x96xf32> to vector<8x32xf32>
    %43 = vector.extract_strided_slice %25 {offsets = [0, 64], sizes = [8, 32], strides = [1, 1]} : vector<8x96xf32> to vector<8x32xf32>
    %44 = arith.addf %43, %18 : vector<8x32xf32>
    %45 = arith.mulf %33, %44 : vector<8x32xf32>
    %46 = arith.addf %42, %45 : vector<8x32xf32>
    %47 = math.tanh %46 : vector<8x32xf32>
    %cst_25 = arith.constant 1.000000e+00 : f32
    %48 = vector.broadcast %cst_25 : f32 to vector<8x32xf32>
    %49 = arith.subf %48, %41 : vector<8x32xf32>
    %50 = arith.mulf %49, %47 : vector<8x32xf32>
    %51 = arith.mulf %41, %19 : vector<8x32xf32>
    %52 = arith.addf %50, %51 : vector<8x32xf32>
    %53 = arith.index_cast %c0_i32 : i32 to index
    %c0_26 = arith.constant 0 : index
    %c0_27 = arith.constant 0 : index
    %54 = vector.load %arg11[%53, %c0_26, %c0_27] : memref<8x8x32xf32, #tpu.memory_space<vmem>>, vector<1x8x32xf32>
    %55 = vector.shape_cast %54 : vector<1x8x32xf32> to vector<8x32xf32>
    %56 = vector.shape_cast %52 : vector<8x32xf32> to vector<1x8x32xf32>
    tpu.vector_store %arg11[%53, %c0_26, %c0_27], %56 {strides = array<i32>} : memref<8x8x32xf32, #tpu.memory_space<vmem>>, vector<1x8x32xf32>,
    %c1_i32 = arith.constant 1 : i32
    %57 = arith.index_cast %c1_i32 : i32 to index
    %c0_28 = arith.constant 0 : index
    %c0_29 = arith.constant 0 : index
    %58 = vector.load %arg13[%57, %c0_28, %c0_29] : memref<8x8x32xf32, #tpu.memory_space<vmem>>, vector<1x8x32xf32>
    %59 = vector.shape_cast %58 : vector<1x8x32xf32> to vector<8x32xf32>
    %cst_30 = arith.constant dense<0.000000e+00> : vector<8x96xf32>
    %60 = tpu.matmul %59, %11, %cst_30 {dimension_numbers = #tpu.dot_dimension_numbers<[1], [0], [0], [1], [0, 0, 1, 1], [], []>} : vector<8x32xf32>, vector<32x96xf32>, vector<8x96xf32> -> vector<8x96xf32>
    %61 = arith.addf %60, %15 : vector<8x96xf32>
    %cst_31 = arith.constant dense<0.000000e+00> : vector<8x96xf32>
    %62 = tpu.matmul %52, %12, %cst_31 {dimension_numbers = #tpu.dot_dimension_numbers<[1], [0], [0], [1], [0, 0, 1, 1], [], []>} : vector<8x32xf32>, vector<32x96xf32>, vector<8x96xf32> -> vector<8x96xf32>
    %63 = vector.extract_strided_slice %61 {offsets = [0, 0], sizes = [8, 32], strides = [1, 1]} : vector<8x96xf32> to vector<8x32xf32>
    %64 = vector.extract_strided_slice %62 {offsets = [0, 0], sizes = [8, 32], strides = [1, 1]} : vector<8x96xf32> to vector<8x32xf32>
    %65 = arith.addf %63, %64 : vector<8x32xf32>
    %66 = arith.negf %65 : vector<8x32xf32>
    %67 = math.exp %66 : vector<8x32xf32>
    %cst_32 = arith.constant 1.000000e+00 : f32
    %68 = vector.broadcast %cst_32 : f32 to vector<8x32xf32>
    %69 = arith.addf %68, %67 : vector<8x32xf32>
    %70 = arith.divf %68, %69 : vector<8x32xf32>
    %71 = vector.extract_strided_slice %61 {offsets = [0, 32], sizes = [8, 32], strides = [1, 1]} : vector<8x96xf32> to vector<8x32xf32>
    %72 = vector.extract_strided_slice %62 {offsets = [0, 32], sizes = [8, 32], strides = [1, 1]} : vector<8x96xf32> to vector<8x32xf32>
    %73 = arith.addf %71, %72 : vector<8x32xf32>
    %74 = arith.negf %73 : vector<8x32xf32>
    %75 = math.exp %74 : vector<8x32xf32>
    %cst_33 = arith.constant 1.000000e+00 : f32
    %76 = vector.broadcast %cst_33 : f32 to vector<8x32xf32>
    %77 = arith.addf %76, %75 : vector<8x32xf32>
    %78 = arith.divf %76, %77 : vector<8x32xf32>
    %79 = vector.extract_strided_slice %61 {offsets = [0, 64], sizes = [8, 32], strides = [1, 1]} : vector<8x96xf32> to vector<8x32xf32>
    %80 = vector.extract_strided_slice %62 {offsets = [0, 64], sizes = [8, 32], strides = [1, 1]} : vector<8x96xf32> to vector<8x32xf32>
    %81 = arith.addf %80, %18 : vector<8x32xf32>
    %82 = arith.mulf %70, %81 : vector<8x32xf32>
    %83 = arith.addf %79, %82 : vector<8x32xf32>
    %84 = math.tanh %83 : vector<8x32xf32>
    %cst_34 = arith.constant 1.000000e+00 : f32
    %85 = vector.broadcast %cst_34 : f32 to vector<8x32xf32>
    %86 = arith.subf %85, %78 : vector<8x32xf32>
    %87 = arith.mulf %86, %84 : vector<8x32xf32>
    %88 = arith.mulf %78, %52 : vector<8x32xf32>
    %89 = arith.addf %87, %88 : vector<8x32xf32>
    %90 = arith.index_cast %c1_i32 : i32 to index
    %c0_35 = arith.constant 0 : index
    %c0_36 = arith.constant 0 : index
    %91 = vector.load %arg11[%90, %c0_35, %c0_36] : memref<8x8x32xf32, #tpu.memory_space<vmem>>, vector<1x8x32xf32>
    %92 = vector.shape_cast %91 : vector<1x8x32xf32> to vector<8x32xf32>
    %93 = vector.shape_cast %89 : vector<8x32xf32> to vector<1x8x32xf32>
    tpu.vector_store %arg11[%90, %c0_35, %c0_36], %93 {strides = array<i32>} : memref<8x8x32xf32, #tpu.memory_space<vmem>>, vector<1x8x32xf32>,
    %c2_i32 = arith.constant 2 : i32
    %94 = arith.index_cast %c2_i32 : i32 to index
    %c0_37 = arith.constant 0 : index
    %c0_38 = arith.constant 0 : index
    %95 = vector.load %arg13[%94, %c0_37, %c0_38] : memref<8x8x32xf32, #tpu.memory_space<vmem>>, vector<1x8x32xf32>
    %96 = vector.shape_cast %95 : vector<1x8x32xf32> to vector<8x32xf32>
    %cst_39 = arith.constant dense<0.000000e+00> : vector<8x96xf32>
    %97 = tpu.matmul %96, %11, %cst_39 {dimension_numbers = #tpu.dot_dimension_numbers<[1], [0], [0], [1], [0, 0, 1, 1], [], []>} : vector<8x32xf32>, vector<32x96xf32>, vector<8x96xf32> -> vector<8x96xf32>
    %98 = arith.addf %97, %15 : vector<8x96xf32>
    %cst_40 = arith.constant dense<0.000000e+00> : vector<8x96xf32>
    %99 = tpu.matmul %89, %12, %cst_40 {dimension_numbers = #tpu.dot_dimension_numbers<[1], [0], [0], [1], [0, 0, 1, 1], [], []>} : vector<8x32xf32>, vector<32x96xf32>, vector<8x96xf32> -> vector<8x96xf32>
    %100 = vector.extract_strided_slice %98 {offsets = [0, 0], sizes = [8, 32], strides = [1, 1]} : vector<8x96xf32> to vector<8x32xf32>
    %101 = vector.extract_strided_slice %99 {offsets = [0, 0], sizes = [8, 32], strides = [1, 1]} : vector<8x96xf32> to vector<8x32xf32>
    %102 = arith.addf %100, %101 : vector<8x32xf32>
    %103 = arith.negf %102 : vector<8x32xf32>
    %104 = math.exp %103 : vector<8x32xf32>
    %cst_41 = arith.constant 1.000000e+00 : f32
    %105 = vector.broadcast %cst_41 : f32 to vector<8x32xf32>
    %106 = arith.addf %105, %104 : vector<8x32xf32>
    %107 = arith.divf %105, %106 : vector<8x32xf32>
    %108 = vector.extract_strided_slice %98 {offsets = [0, 32], sizes = [8, 32], strides = [1, 1]} : vector<8x96xf32> to vector<8x32xf32>
    %109 = vector.extract_strided_slice %99 {offsets = [0, 32], sizes = [8, 32], strides = [1, 1]} : vector<8x96xf32> to vector<8x32xf32>
    %110 = arith.addf %108, %109 : vector<8x32xf32>
    %111 = arith.negf %110 : vector<8x32xf32>
    %112 = math.exp %111 : vector<8x32xf32>
    %cst_42 = arith.constant 1.000000e+00 : f32
    %113 = vector.broadcast %cst_42 : f32 to vector<8x32xf32>
    %114 = arith.addf %113, %112 : vector<8x32xf32>
    %115 = arith.divf %113, %114 : vector<8x32xf32>
    %116 = vector.extract_strided_slice %98 {offsets = [0, 64], sizes = [8, 32], strides = [1, 1]} : vector<8x96xf32> to vector<8x32xf32>
    %117 = vector.extract_strided_slice %99 {offsets = [0, 64], sizes = [8, 32], strides = [1, 1]} : vector<8x96xf32> to vector<8x32xf32>
    %118 = arith.addf %117, %18 : vector<8x32xf32>
    %119 = arith.mulf %107, %118 : vector<8x32xf32>
    %120 = arith.addf %116, %119 : vector<8x32xf32>
    %121 = math.tanh %120 : vector<8x32xf32>
    %cst_43 = arith.constant 1.000000e+00 : f32
    %122 = vector.broadcast %cst_43 : f32 to vector<8x32xf32>
    %123 = arith.subf %122, %115 : vector<8x32xf32>
    %124 = arith.mulf %123, %121 : vector<8x32xf32>
    %125 = arith.mulf %115, %89 : vector<8x32xf32>
    %126 = arith.addf %124, %125 : vector<8x32xf32>
    %127 = arith.index_cast %c2_i32 : i32 to index
    %c0_44 = arith.constant 0 : index
    %c0_45 = arith.constant 0 : index
    %128 = vector.load %arg11[%127, %c0_44, %c0_45] : memref<8x8x32xf32, #tpu.memory_space<vmem>>, vector<1x8x32xf32>
    %129 = vector.shape_cast %128 : vector<1x8x32xf32> to vector<8x32xf32>
    %130 = vector.shape_cast %126 : vector<8x32xf32> to vector<1x8x32xf32>
    tpu.vector_store %arg11[%127, %c0_44, %c0_45], %130 {strides = array<i32>} : memref<8x8x32xf32, #tpu.memory_space<vmem>>, vector<1x8x32xf32>,
    %c3_i32 = arith.constant 3 : i32
    %131 = arith.index_cast %c3_i32 : i32 to index
    %c0_46 = arith.constant 0 : index
    %c0_47 = arith.constant 0 : index
    %132 = vector.load %arg13[%131, %c0_46, %c0_47] : memref<8x8x32xf32, #tpu.memory_space<vmem>>, vector<1x8x32xf32>
    %133 = vector.shape_cast %132 : vector<1x8x32xf32> to vector<8x32xf32>
    %cst_48 = arith.constant dense<0.000000e+00> : vector<8x96xf32>
    %134 = tpu.matmul %133, %11, %cst_48 {dimension_numbers = #tpu.dot_dimension_numbers<[1], [0], [0], [1], [0, 0, 1, 1], [], []>} : vector<8x32xf32>, vector<32x96xf32>, vector<8x96xf32> -> vector<8x96xf32>
    %135 = arith.addf %134, %15 : vector<8x96xf32>
    %cst_49 = arith.constant dense<0.000000e+00> : vector<8x96xf32>
    %136 = tpu.matmul %126, %12, %cst_49 {dimension_numbers = #tpu.dot_dimension_numbers<[1], [0], [0], [1], [0, 0, 1, 1], [], []>} : vector<8x32xf32>, vector<32x96xf32>, vector<8x96xf32> -> vector<8x96xf32>
    %137 = vector.extract_strided_slice %135 {offsets = [0, 0], sizes = [8, 32], strides = [1, 1]} : vector<8x96xf32> to vector<8x32xf32>
    %138 = vector.extract_strided_slice %136 {offsets = [0, 0], sizes = [8, 32], strides = [1, 1]} : vector<8x96xf32> to vector<8x32xf32>
    %139 = arith.addf %137, %138 : vector<8x32xf32>
    %140 = arith.negf %139 : vector<8x32xf32>
    %141 = math.exp %140 : vector<8x32xf32>
    %cst_50 = arith.constant 1.000000e+00 : f32
    %142 = vector.broadcast %cst_50 : f32 to vector<8x32xf32>
    %143 = arith.addf %142, %141 : vector<8x32xf32>
    %144 = arith.divf %142, %143 : vector<8x32xf32>
    %145 = vector.extract_strided_slice %135 {offsets = [0, 32], sizes = [8, 32], strides = [1, 1]} : vector<8x96xf32> to vector<8x32xf32>
    %146 = vector.extract_strided_slice %136 {offsets = [0, 32], sizes = [8, 32], strides = [1, 1]} : vector<8x96xf32> to vector<8x32xf32>
    %147 = arith.addf %145, %146 : vector<8x32xf32>
    %148 = arith.negf %147 : vector<8x32xf32>
    %149 = math.exp %148 : vector<8x32xf32>
    %cst_51 = arith.constant 1.000000e+00 : f32
    %150 = vector.broadcast %cst_51 : f32 to vector<8x32xf32>
    %151 = arith.addf %150, %149 : vector<8x32xf32>
    %152 = arith.divf %150, %151 : vector<8x32xf32>
    %153 = vector.extract_strided_slice %135 {offsets = [0, 64], sizes = [8, 32], strides = [1, 1]} : vector<8x96xf32> to vector<8x32xf32>
    %154 = vector.extract_strided_slice %136 {offsets = [0, 64], sizes = [8, 32], strides = [1, 1]} : vector<8x96xf32> to vector<8x32xf32>
    %155 = arith.addf %154, %18 : vector<8x32xf32>
    %156 = arith.mulf %144, %155 : vector<8x32xf32>
    %157 = arith.addf %153, %156 : vector<8x32xf32>
    %158 = math.tanh %157 : vector<8x32xf32>
    %cst_52 = arith.constant 1.000000e+00 : f32
    %159 = vector.broadcast %cst_52 : f32 to vector<8x32xf32>
    %160 = arith.subf %159, %152 : vector<8x32xf32>
    %161 = arith.mulf %160, %158 : vector<8x32xf32>
    %162 = arith.mulf %152, %126 : vector<8x32xf32>
    %163 = arith.addf %161, %162 : vector<8x32xf32>
    %164 = arith.index_cast %c3_i32 : i32 to index
    %c0_53 = arith.constant 0 : index
    %c0_54 = arith.constant 0 : index
    %165 = vector.load %arg11[%164, %c0_53, %c0_54] : memref<8x8x32xf32, #tpu.memory_space<vmem>>, vector<1x8x32xf32>
    %166 = vector.shape_cast %165 : vector<1x8x32xf32> to vector<8x32xf32>
    %167 = vector.shape_cast %163 : vector<8x32xf32> to vector<1x8x32xf32>
    tpu.vector_store %arg11[%164, %c0_53, %c0_54], %167 {strides = array<i32>} : memref<8x8x32xf32, #tpu.memory_space<vmem>>, vector<1x8x32xf32>,
    %c4_i32 = arith.constant 4 : i32
    %168 = arith.index_cast %c4_i32 : i32 to index
    %c0_55 = arith.constant 0 : index
    %c0_56 = arith.constant 0 : index
    %169 = vector.load %arg13[%168, %c0_55, %c0_56] : memref<8x8x32xf32, #tpu.memory_space<vmem>>, vector<1x8x32xf32>
    %170 = vector.shape_cast %169 : vector<1x8x32xf32> to vector<8x32xf32>
    %cst_57 = arith.constant dense<0.000000e+00> : vector<8x96xf32>
    %171 = tpu.matmul %170, %11, %cst_57 {dimension_numbers = #tpu.dot_dimension_numbers<[1], [0], [0], [1], [0, 0, 1, 1], [], []>} : vector<8x32xf32>, vector<32x96xf32>, vector<8x96xf32> -> vector<8x96xf32>
    %172 = arith.addf %171, %15 : vector<8x96xf32>
    %cst_58 = arith.constant dense<0.000000e+00> : vector<8x96xf32>
    %173 = tpu.matmul %163, %12, %cst_58 {dimension_numbers = #tpu.dot_dimension_numbers<[1], [0], [0], [1], [0, 0, 1, 1], [], []>} : vector<8x32xf32>, vector<32x96xf32>, vector<8x96xf32> -> vector<8x96xf32>
    %174 = vector.extract_strided_slice %172 {offsets = [0, 0], sizes = [8, 32], strides = [1, 1]} : vector<8x96xf32> to vector<8x32xf32>
    %175 = vector.extract_strided_slice %173 {offsets = [0, 0], sizes = [8, 32], strides = [1, 1]} : vector<8x96xf32> to vector<8x32xf32>
    %176 = arith.addf %174, %175 : vector<8x32xf32>
    %177 = arith.negf %176 : vector<8x32xf32>
    %178 = math.exp %177 : vector<8x32xf32>
    %cst_59 = arith.constant 1.000000e+00 : f32
    %179 = vector.broadcast %cst_59 : f32 to vector<8x32xf32>
    %180 = arith.addf %179, %178 : vector<8x32xf32>
    %181 = arith.divf %179, %180 : vector<8x32xf32>
    %182 = vector.extract_strided_slice %172 {offsets = [0, 32], sizes = [8, 32], strides = [1, 1]} : vector<8x96xf32> to vector<8x32xf32>
    %183 = vector.extract_strided_slice %173 {offsets = [0, 32], sizes = [8, 32], strides = [1, 1]} : vector<8x96xf32> to vector<8x32xf32>
    %184 = arith.addf %182, %183 : vector<8x32xf32>
    %185 = arith.negf %184 : vector<8x32xf32>
    %186 = math.exp %185 : vector<8x32xf32>
    %cst_60 = arith.constant 1.000000e+00 : f32
    %187 = vector.broadcast %cst_60 : f32 to vector<8x32xf32>
    %188 = arith.addf %187, %186 : vector<8x32xf32>
    %189 = arith.divf %187, %188 : vector<8x32xf32>
    %190 = vector.extract_strided_slice %172 {offsets = [0, 64], sizes = [8, 32], strides = [1, 1]} : vector<8x96xf32> to vector<8x32xf32>
    %191 = vector.extract_strided_slice %173 {offsets = [0, 64], sizes = [8, 32], strides = [1, 1]} : vector<8x96xf32> to vector<8x32xf32>
    %192 = arith.addf %191, %18 : vector<8x32xf32>
    %193 = arith.mulf %181, %192 : vector<8x32xf32>
    %194 = arith.addf %190, %193 : vector<8x32xf32>
    %195 = math.tanh %194 : vector<8x32xf32>
    %cst_61 = arith.constant 1.000000e+00 : f32
    %196 = vector.broadcast %cst_61 : f32 to vector<8x32xf32>
    %197 = arith.subf %196, %189 : vector<8x32xf32>
    %198 = arith.mulf %197, %195 : vector<8x32xf32>
    %199 = arith.mulf %189, %163 : vector<8x32xf32>
    %200 = arith.addf %198, %199 : vector<8x32xf32>
    %201 = arith.index_cast %c4_i32 : i32 to index
    %c0_62 = arith.constant 0 : index
    %c0_63 = arith.constant 0 : index
    %202 = vector.load %arg11[%201, %c0_62, %c0_63] : memref<8x8x32xf32, #tpu.memory_space<vmem>>, vector<1x8x32xf32>
    %203 = vector.shape_cast %202 : vector<1x8x32xf32> to vector<8x32xf32>
    %204 = vector.shape_cast %200 : vector<8x32xf32> to vector<1x8x32xf32>
    tpu.vector_store %arg11[%201, %c0_62, %c0_63], %204 {strides = array<i32>} : memref<8x8x32xf32, #tpu.memory_space<vmem>>, vector<1x8x32xf32>,
    %c5_i32 = arith.constant 5 : i32
    %205 = arith.index_cast %c5_i32 : i32 to index
    %c0_64 = arith.constant 0 : index
    %c0_65 = arith.constant 0 : index
    %206 = vector.load %arg13[%205, %c0_64, %c0_65] : memref<8x8x32xf32, #tpu.memory_space<vmem>>, vector<1x8x32xf32>
    %207 = vector.shape_cast %206 : vector<1x8x32xf32> to vector<8x32xf32>
    %cst_66 = arith.constant dense<0.000000e+00> : vector<8x96xf32>
    %208 = tpu.matmul %207, %11, %cst_66 {dimension_numbers = #tpu.dot_dimension_numbers<[1], [0], [0], [1], [0, 0, 1, 1], [], []>} : vector<8x32xf32>, vector<32x96xf32>, vector<8x96xf32> -> vector<8x96xf32>
    %209 = arith.addf %208, %15 : vector<8x96xf32>
    %cst_67 = arith.constant dense<0.000000e+00> : vector<8x96xf32>
    %210 = tpu.matmul %200, %12, %cst_67 {dimension_numbers = #tpu.dot_dimension_numbers<[1], [0], [0], [1], [0, 0, 1, 1], [], []>} : vector<8x32xf32>, vector<32x96xf32>, vector<8x96xf32> -> vector<8x96xf32>
    %211 = vector.extract_strided_slice %209 {offsets = [0, 0], sizes = [8, 32], strides = [1, 1]} : vector<8x96xf32> to vector<8x32xf32>
    %212 = vector.extract_strided_slice %210 {offsets = [0, 0], sizes = [8, 32], strides = [1, 1]} : vector<8x96xf32> to vector<8x32xf32>
    %213 = arith.addf %211, %212 : vector<8x32xf32>
    %214 = arith.negf %213 : vector<8x32xf32>
    %215 = math.exp %214 : vector<8x32xf32>
    %cst_68 = arith.constant 1.000000e+00 : f32
    %216 = vector.broadcast %cst_68 : f32 to vector<8x32xf32>
    %217 = arith.addf %216, %215 : vector<8x32xf32>
    %218 = arith.divf %216, %217 : vector<8x32xf32>
    %219 = vector.extract_strided_slice %209 {offsets = [0, 32], sizes = [8, 32], strides = [1, 1]} : vector<8x96xf32> to vector<8x32xf32>
    %220 = vector.extract_strided_slice %210 {offsets = [0, 32], sizes = [8, 32], strides = [1, 1]} : vector<8x96xf32> to vector<8x32xf32>
    %221 = arith.addf %219, %220 : vector<8x32xf32>
    %222 = arith.negf %221 : vector<8x32xf32>
    %223 = math.exp %222 : vector<8x32xf32>
    %cst_69 = arith.constant 1.000000e+00 : f32
    %224 = vector.broadcast %cst_69 : f32 to vector<8x32xf32>
    %225 = arith.addf %224, %223 : vector<8x32xf32>
    %226 = arith.divf %224, %225 : vector<8x32xf32>
    %227 = vector.extract_strided_slice %209 {offsets = [0, 64], sizes = [8, 32], strides = [1, 1]} : vector<8x96xf32> to vector<8x32xf32>
    %228 = vector.extract_strided_slice %210 {offsets = [0, 64], sizes = [8, 32], strides = [1, 1]} : vector<8x96xf32> to vector<8x32xf32>
    %229 = arith.addf %228, %18 : vector<8x32xf32>
    %230 = arith.mulf %218, %229 : vector<8x32xf32>
    %231 = arith.addf %227, %230 : vector<8x32xf32>
    %232 = math.tanh %231 : vector<8x32xf32>
    %cst_70 = arith.constant 1.000000e+00 : f32
    %233 = vector.broadcast %cst_70 : f32 to vector<8x32xf32>
    %234 = arith.subf %233, %226 : vector<8x32xf32>
    %235 = arith.mulf %234, %232 : vector<8x32xf32>
    %236 = arith.mulf %226, %200 : vector<8x32xf32>
    %237 = arith.addf %235, %236 : vector<8x32xf32>
    %238 = arith.index_cast %c5_i32 : i32 to index
    %c0_71 = arith.constant 0 : index
    %c0_72 = arith.constant 0 : index
    %239 = vector.load %arg11[%238, %c0_71, %c0_72] : memref<8x8x32xf32, #tpu.memory_space<vmem>>, vector<1x8x32xf32>
    %240 = vector.shape_cast %239 : vector<1x8x32xf32> to vector<8x32xf32>
    %241 = vector.shape_cast %237 : vector<8x32xf32> to vector<1x8x32xf32>
    tpu.vector_store %arg11[%238, %c0_71, %c0_72], %241 {strides = array<i32>} : memref<8x8x32xf32, #tpu.memory_space<vmem>>, vector<1x8x32xf32>,
    %c6_i32 = arith.constant 6 : i32
    %242 = arith.index_cast %c6_i32 : i32 to index
    %c0_73 = arith.constant 0 : index
    %c0_74 = arith.constant 0 : index
    %243 = vector.load %arg13[%242, %c0_73, %c0_74] : memref<8x8x32xf32, #tpu.memory_space<vmem>>, vector<1x8x32xf32>
    %244 = vector.shape_cast %243 : vector<1x8x32xf32> to vector<8x32xf32>
    %cst_75 = arith.constant dense<0.000000e+00> : vector<8x96xf32>
    %245 = tpu.matmul %244, %11, %cst_75 {dimension_numbers = #tpu.dot_dimension_numbers<[1], [0], [0], [1], [0, 0, 1, 1], [], []>} : vector<8x32xf32>, vector<32x96xf32>, vector<8x96xf32> -> vector<8x96xf32>
    %246 = arith.addf %245, %15 : vector<8x96xf32>
    %cst_76 = arith.constant dense<0.000000e+00> : vector<8x96xf32>
    %247 = tpu.matmul %237, %12, %cst_76 {dimension_numbers = #tpu.dot_dimension_numbers<[1], [0], [0], [1], [0, 0, 1, 1], [], []>} : vector<8x32xf32>, vector<32x96xf32>, vector<8x96xf32> -> vector<8x96xf32>
    %248 = vector.extract_strided_slice %246 {offsets = [0, 0], sizes = [8, 32], strides = [1, 1]} : vector<8x96xf32> to vector<8x32xf32>
    %249 = vector.extract_strided_slice %247 {offsets = [0, 0], sizes = [8, 32], strides = [1, 1]} : vector<8x96xf32> to vector<8x32xf32>
    %250 = arith.addf %248, %249 : vector<8x32xf32>
    %251 = arith.negf %250 : vector<8x32xf32>
    %252 = math.exp %251 : vector<8x32xf32>
    %cst_77 = arith.constant 1.000000e+00 : f32
    %253 = vector.broadcast %cst_77 : f32 to vector<8x32xf32>
    %254 = arith.addf %253, %252 : vector<8x32xf32>
    %255 = arith.divf %253, %254 : vector<8x32xf32>
    %256 = vector.extract_strided_slice %246 {offsets = [0, 32], sizes = [8, 32], strides = [1, 1]} : vector<8x96xf32> to vector<8x32xf32>
    %257 = vector.extract_strided_slice %247 {offsets = [0, 32], sizes = [8, 32], strides = [1, 1]} : vector<8x96xf32> to vector<8x32xf32>
    %258 = arith.addf %256, %257 : vector<8x32xf32>
    %259 = arith.negf %258 : vector<8x32xf32>
    %260 = math.exp %259 : vector<8x32xf32>
    %cst_78 = arith.constant 1.000000e+00 : f32
    %261 = vector.broadcast %cst_78 : f32 to vector<8x32xf32>
    %262 = arith.addf %261, %260 : vector<8x32xf32>
    %263 = arith.divf %261, %262 : vector<8x32xf32>
    %264 = vector.extract_strided_slice %246 {offsets = [0, 64], sizes = [8, 32], strides = [1, 1]} : vector<8x96xf32> to vector<8x32xf32>
    %265 = vector.extract_strided_slice %247 {offsets = [0, 64], sizes = [8, 32], strides = [1, 1]} : vector<8x96xf32> to vector<8x32xf32>
    %266 = arith.addf %265, %18 : vector<8x32xf32>
    %267 = arith.mulf %255, %266 : vector<8x32xf32>
    %268 = arith.addf %264, %267 : vector<8x32xf32>
    %269 = math.tanh %268 : vector<8x32xf32>
    %cst_79 = arith.constant 1.000000e+00 : f32
    %270 = vector.broadcast %cst_79 : f32 to vector<8x32xf32>
    %271 = arith.subf %270, %263 : vector<8x32xf32>
    %272 = arith.mulf %271, %269 : vector<8x32xf32>
    %273 = arith.mulf %263, %237 : vector<8x32xf32>
    %274 = arith.addf %272, %273 : vector<8x32xf32>
    %275 = arith.index_cast %c6_i32 : i32 to index
    %c0_80 = arith.constant 0 : index
    %c0_81 = arith.constant 0 : index
    %276 = vector.load %arg11[%275, %c0_80, %c0_81] : memref<8x8x32xf32, #tpu.memory_space<vmem>>, vector<1x8x32xf32>
    %277 = vector.shape_cast %276 : vector<1x8x32xf32> to vector<8x32xf32>
    %278 = vector.shape_cast %274 : vector<8x32xf32> to vector<1x8x32xf32>
    tpu.vector_store %arg11[%275, %c0_80, %c0_81], %278 {strides = array<i32>} : memref<8x8x32xf32, #tpu.memory_space<vmem>>, vector<1x8x32xf32>,
    %c7_i32 = arith.constant 7 : i32
    %279 = arith.index_cast %c7_i32 : i32 to index
    %c0_82 = arith.constant 0 : index
    %c0_83 = arith.constant 0 : index
    %280 = vector.load %arg13[%279, %c0_82, %c0_83] : memref<8x8x32xf32, #tpu.memory_space<vmem>>, vector<1x8x32xf32>
    %281 = vector.shape_cast %280 : vector<1x8x32xf32> to vector<8x32xf32>
    %cst_84 = arith.constant dense<0.000000e+00> : vector<8x96xf32>
    %282 = tpu.matmul %281, %11, %cst_84 {dimension_numbers = #tpu.dot_dimension_numbers<[1], [0], [0], [1], [0, 0, 1, 1], [], []>} : vector<8x32xf32>, vector<32x96xf32>, vector<8x96xf32> -> vector<8x96xf32>
    %283 = arith.addf %282, %15 : vector<8x96xf32>
    %cst_85 = arith.constant dense<0.000000e+00> : vector<8x96xf32>
    %284 = tpu.matmul %274, %12, %cst_85 {dimension_numbers = #tpu.dot_dimension_numbers<[1], [0], [0], [1], [0, 0, 1, 1], [], []>} : vector<8x32xf32>, vector<32x96xf32>, vector<8x96xf32> -> vector<8x96xf32>
    %285 = vector.extract_strided_slice %283 {offsets = [0, 0], sizes = [8, 32], strides = [1, 1]} : vector<8x96xf32> to vector<8x32xf32>
    %286 = vector.extract_strided_slice %284 {offsets = [0, 0], sizes = [8, 32], strides = [1, 1]} : vector<8x96xf32> to vector<8x32xf32>
    %287 = arith.addf %285, %286 : vector<8x32xf32>
    %288 = arith.negf %287 : vector<8x32xf32>
    %289 = math.exp %288 : vector<8x32xf32>
    %cst_86 = arith.constant 1.000000e+00 : f32
    %290 = vector.broadcast %cst_86 : f32 to vector<8x32xf32>
    %291 = arith.addf %290, %289 : vector<8x32xf32>
    %292 = arith.divf %290, %291 : vector<8x32xf32>
    %293 = vector.extract_strided_slice %283 {offsets = [0, 32], sizes = [8, 32], strides = [1, 1]} : vector<8x96xf32> to vector<8x32xf32>
    %294 = vector.extract_strided_slice %284 {offsets = [0, 32], sizes = [8, 32], strides = [1, 1]} : vector<8x96xf32> to vector<8x32xf32>
    %295 = arith.addf %293, %294 : vector<8x32xf32>
    %296 = arith.negf %295 : vector<8x32xf32>
    %297 = math.exp %296 : vector<8x32xf32>
    %cst_87 = arith.constant 1.000000e+00 : f32
    %298 = vector.broadcast %cst_87 : f32 to vector<8x32xf32>
    %299 = arith.addf %298, %297 : vector<8x32xf32>
    %300 = arith.divf %298, %299 : vector<8x32xf32>
    %301 = vector.extract_strided_slice %283 {offsets = [0, 64], sizes = [8, 32], strides = [1, 1]} : vector<8x96xf32> to vector<8x32xf32>
    %302 = vector.extract_strided_slice %284 {offsets = [0, 64], sizes = [8, 32], strides = [1, 1]} : vector<8x96xf32> to vector<8x32xf32>
    %303 = arith.addf %302, %18 : vector<8x32xf32>
    %304 = arith.mulf %292, %303 : vector<8x32xf32>
    %305 = arith.addf %301, %304 : vector<8x32xf32>
    %306 = math.tanh %305 : vector<8x32xf32>
    %cst_88 = arith.constant 1.000000e+00 : f32
    %307 = vector.broadcast %cst_88 : f32 to vector<8x32xf32>
    %308 = arith.subf %307, %300 : vector<8x32xf32>
    %309 = arith.mulf %308, %306 : vector<8x32xf32>
    %310 = arith.mulf %300, %274 : vector<8x32xf32>
    %311 = arith.addf %309, %310 : vector<8x32xf32>
    %312 = arith.index_cast %c7_i32 : i32 to index
    %c0_89 = arith.constant 0 : index
    %c0_90 = arith.constant 0 : index
    %313 = vector.load %arg11[%312, %c0_89, %c0_90] : memref<8x8x32xf32, #tpu.memory_space<vmem>>, vector<1x8x32xf32>
    %314 = vector.shape_cast %313 : vector<1x8x32xf32> to vector<8x32xf32>
    %315 = vector.shape_cast %311 : vector<8x32xf32> to vector<1x8x32xf32>
    tpu.vector_store %arg11[%312, %c0_89, %c0_90], %315 {strides = array<i32>} : memref<8x8x32xf32, #tpu.memory_space<vmem>>, vector<1x8x32xf32>,
    %c8_i32 = arith.constant 8 : i32
    %c7 = arith.constant 7 : index
    %c0_91 = arith.constant 0 : index
    %c0_92 = arith.constant 0 : index
    %316 = vector.load %arg13[%c7, %c0_91, %c0_92] : memref<8x8x32xf32, #tpu.memory_space<vmem>>, vector<1x8x32xf32>
    %317 = vector.shape_cast %316 : vector<1x8x32xf32> to vector<8x32xf32>
    %c0_93 = arith.constant 0 : index
    %c0_94 = arith.constant 0 : index
    %318 = vector.load %arg8[%c0_93, %c0_94] : memref<32x24xf32, #tpu.memory_space<vmem>>, vector<32x24xf32>
    %cst_95 = arith.constant dense<0.000000e+00> : vector<8x24xf32>
    %319 = tpu.matmul %317, %318, %cst_95 {dimension_numbers = #tpu.dot_dimension_numbers<[1], [0], [0], [1], [0, 0, 1, 1], [], []>} : vector<8x32xf32>, vector<32x24xf32>, vector<8x24xf32> -> vector<8x24xf32>
    %c0_96 = arith.constant 0 : index
    %c0_97 = arith.constant 0 : index
    %320 = vector.load %arg9[%c0_96, %c0_97] : memref<32x24xf32, #tpu.memory_space<vmem>>, vector<32x24xf32>
    %cst_98 = arith.constant dense<0.000000e+00> : vector<8x24xf32>
    %321 = tpu.matmul %311, %320, %cst_98 {dimension_numbers = #tpu.dot_dimension_numbers<[1], [0], [0], [1], [0, 0, 1, 1], [], []>} : vector<8x32xf32>, vector<32x24xf32>, vector<8x24xf32> -> vector<8x24xf32>
    %322 = arith.addf %319, %321 : vector<8x24xf32>
    %c0_99 = arith.constant 0 : index
    %c0_100 = arith.constant 0 : index
    %323 = vector.load %arg10[%c0_99, %c0_100] : memref<1x24xf32, #tpu.memory_space<vmem>>, vector<1x24xf32>
    %324 = vector.broadcast %323 : vector<1x24xf32> to vector<8x24xf32>
    %325 = arith.addf %322, %324 : vector<8x24xf32>
    %c0_101 = arith.constant 0 : index
    %c0_102 = arith.constant 0 : index
    %326 = vector.load %arg12[%c0_101, %c0_102] : memref<8x24xf32, #tpu.memory_space<vmem>>, vector<8x24xf32>
    tpu.vector_store %arg12[%c0_101, %c0_102], %325 {strides = array<i32>} : memref<8x24xf32, #tpu.memory_space<vmem>>, vector<8x24xf32>,
    return
  }
  func.func @transform_0(%arg0: i32) -> (i32, i32, i32) {
    %c0_i32 = arith.constant 0 : i32
    %c0_i32_0 = arith.constant 0 : i32
    %c0_i32_1 = arith.constant 0 : i32
    %c0_i32_2 = arith.constant 0 : i32
    return %c0_i32, %c0_i32_0, %c0_i32_1 : i32, i32, i32
  }
  func.func @transform_1(%arg0: i32) -> (i32, i32) {
    %c0_i32 = arith.constant 0 : i32
    %c0_i32_0 = arith.constant 0 : i32
    %c0_i32_1 = arith.constant 0 : i32
    return %c0_i32, %c0_i32_0 : i32, i32
  }
  func.func @transform_2(%arg0: i32) -> (i32, i32) {
    %c0_i32 = arith.constant 0 : i32
    %c0_i32_0 = arith.constant 0 : i32
    %c0_i32_1 = arith.constant 0 : i32
    return %c0_i32, %c0_i32_0 : i32, i32
  }
  func.func @transform_3(%arg0: i32) -> (i32, i32) {
    %c0_i32 = arith.constant 0 : i32
    %c0_i32_0 = arith.constant 0 : i32
    %c0_i32_1 = arith.constant 0 : i32
    return %c0_i32, %c0_i32_0 : i32, i32
  }
  func.func @transform_4(%arg0: i32) -> (i32, i32) {
    %c0_i32 = arith.constant 0 : i32
    %c0_i32_0 = arith.constant 0 : i32
    %c0_i32_1 = arith.constant 0 : i32
    return %c0_i32, %c0_i32_0 : i32, i32
  }
  func.func @transform_5(%arg0: i32) -> (i32, i32) {
    %c0_i32 = arith.constant 0 : i32
    %c0_i32_0 = arith.constant 0 : i32
    %c0_i32_1 = arith.constant 0 : i32
    return %c0_i32, %c0_i32_0 : i32, i32
  }
  func.func @transform_6(%arg0: i32) -> (i32, i32) {
    %c0_i32 = arith.constant 0 : i32
    %c0_i32_0 = arith.constant 0 : i32
    %c0_i32_1 = arith.constant 0 : i32
    return %c0_i32, %c0_i32_0 : i32, i32
  }
  func.func @transform_7(%arg0: i32) -> (i32, i32) {
    %c0_i32 = arith.constant 0 : i32
    %c0_i32_0 = arith.constant 0 : i32
    %c0_i32_1 = arith.constant 0 : i32
    return %c0_i32, %c0_i32_0 : i32, i32
  }
  func.func @transform_8(%arg0: i32) -> (i32, i32) {
    %c0_i32 = arith.constant 0 : i32
    %c0_i32_0 = arith.constant 0 : i32
    %c0_i32_1 = arith.constant 0 : i32
    return %c0_i32, %c0_i32_0 : i32, i32
  }
  func.func @transform_9(%arg0: i32) -> (i32, i32) {
    %c0_i32 = arith.constant 0 : i32
    %c0_i32_0 = arith.constant 0 : i32
    %c0_i32_1 = arith.constant 0 : i32
    return %c0_i32, %c0_i32_0 : i32, i32
  }
  func.func @transform_10(%arg0: i32) -> (i32, i32, i32) {
    %c0_i32 = arith.constant 0 : i32
    %c0_i32_0 = arith.constant 0 : i32
    %c0_i32_1 = arith.constant 0 : i32
    %c0_i32_2 = arith.constant 0 : i32
    return %c0_i32, %c0_i32_0, %c0_i32_1 : i32, i32, i32
  }
  func.func @transform_11(%arg0: i32) -> (i32, i32) {
    %c0_i32 = arith.constant 0 : i32
    %c0_i32_0 = arith.constant 0 : i32
    %c0_i32_1 = arith.constant 0 : i32
    return %c0_i32, %c0_i32_0 : i32, i32
  }
}

</mosaic_0001>

<llo_original>
// kernel: recurrent_sr_forward.1
$region0: #{recurrent_sr_forward.1}
  #allocation0 [shape = 'u32[]', space=smem, size = 0x4, offset = 0x4, fixed_abs, tag = 'smem constant byte address 0x4 - core index']
  #allocation1 [shape = 'u32[144,128]{1,0:T(1,128)}', space=vmem, size = 0x12000, scoped, tag = 'internal scratch']
  #allocation2 [shape = 'f32[8,8,32]{2,1,0:T(8,128)}', space=vmem, size = 0x8000, scoped, tag = 'scratch operand']
  %s0 = inlined_call_operand.vmem [shape: f32[8,8,16], index: 0, kind: input, shape index: {}]
  %s1 = inlined_call_operand.vmem [shape: f32[16,32], index: 1, kind: input, shape index: {}]
  %s2 = inlined_call_operand.vmem [shape: f32[1,32], index: 2, kind: input, shape index: {}]
  %s3 = inlined_call_operand.vmem [shape: f32[32,96], index: 3, kind: input, shape index: {}]
  %s4 = inlined_call_operand.vmem [shape: f32[32,96], index: 4, kind: input, shape index: {}]
  %s5 = inlined_call_operand.vmem [shape: f32[1,96], index: 5, kind: input, shape index: {}]
  %s6 = inlined_call_operand.vmem [shape: f32[1,32], index: 6, kind: input, shape index: {}]
  %s7 = inlined_call_operand.vmem [shape: f32[32,24], index: 7, kind: input, shape index: {}]
  %s8 = inlined_call_operand.vmem [shape: f32[32,24], index: 8, kind: input, shape index: {}]
  %s9 = inlined_call_operand.vmem [shape: f32[1,24], index: 9, kind: input, shape index: {}]
  %s10 = inlined_call_operand.hbm [shape: f32[8,8,32], index: 10, kind: output, shape index: {0}]
  %s11 = inlined_call_operand.vmem [shape: f32[8,24], index: 11, kind: output, shape index: {1}]
  %12 = xla_tuple %s10, %s11
  %s13 = sld [smem:[#allocation0]]
  $region58: #{recurrent_sr_forward.1} parent=0
    _
  %s15 = ssub.s32 1, %s13
  %s16 = scalar_select 0, %s15, %s13
  $region1: #{recurrent_sr_forward.1} parent=0
    #allocation3 [shape = 'u8[32768]{0}', space=vmem, size = 0x8000, scoped, tag = 'output window, operand 0, single buffered']
    #allocation4 [shape = 's32[1]{0}', space=sflag, size = 0x4, scoped, tag = 'scoped memory for recurrent_sr_forward.1']
    %17 = vsyncpa [#allocation4], 0
    // Predicated region
    $region2: #{recurrent_sr_forward.1} parent=1 // pred_check
      _
    $region3: #{recurrent_sr_forward.1} parent=1 // pred_check_branch
      %19 = sbr.rel (0) target = $region5
    $region4: #{recurrent_sr_forward.1} parent=1 // pred_region
      _
    $region5: #{recurrent_sr_forward.1} parent=1 // pred_fallthru
      _
    // Predicated region
    $region6: #{recurrent_sr_forward.1} parent=1 // pred_check
      _
    $region7: #{recurrent_sr_forward.1} parent=1 // pred_check_branch
      %21 = sbr.rel (0) target = $region9
    $region8: #{recurrent_sr_forward.1} parent=1 // pred_region
      _
    $region9: #{recurrent_sr_forward.1} parent=1 // pred_fallthru
      _
    // Predicated region
    $region10: #{recurrent_sr_forward.1} parent=1 // pred_check
      _
    $region11: #{recurrent_sr_forward.1} parent=1 // pred_check_branch
      %23 = sbr.rel (0) target = $region13
    $region12: #{recurrent_sr_forward.1} parent=1 // pred_region
      _
    $region13: #{recurrent_sr_forward.1} parent=1 // pred_fallthru
      _
    // Predicated region
    $region14: #{recurrent_sr_forward.1} parent=1 // pred_check
      _
    $region15: #{recurrent_sr_forward.1} parent=1 // pred_check_branch
      %25 = sbr.rel (0) target = $region17
    $region16: #{recurrent_sr_forward.1} parent=1 // pred_region
      _
    $region17: #{recurrent_sr_forward.1} parent=1 // pred_fallthru
      _
    // Predicated region
    $region18: #{recurrent_sr_forward.1} parent=1 // pred_check
      _
    $region19: #{recurrent_sr_forward.1} parent=1 // pred_check_branch
      %27 = sbr.rel (0) target = $region21
    $region20: #{recurrent_sr_forward.1} parent=1 // pred_region
      _
    $region21: #{recurrent_sr_forward.1} parent=1 // pred_fallthru
      _
    // Predicated region
    $region22: #{recurrent_sr_forward.1} parent=1 // pred_check
      _
    $region23: #{recurrent_sr_forward.1} parent=1 // pred_check_branch
      %29 = sbr.rel (0) target = $region25
    $region24: #{recurrent_sr_forward.1} parent=1 // pred_region
      _
    $region25: #{recurrent_sr_forward.1} parent=1 // pred_fallthru
      _
    // Predicated region
    $region26: #{recurrent_sr_forward.1} parent=1 // pred_check
      _
    $region27: #{recurrent_sr_forward.1} parent=1 // pred_check_branch
      %31 = sbr.rel (0) target = $region29
    $region28: #{recurrent_sr_forward.1} parent=1 // pred_region
      _
    $region29: #{recurrent_sr_forward.1} parent=1 // pred_fallthru
      _
    // Predicated region
    $region30: #{recurrent_sr_forward.1} parent=1 // pred_check
      _
    $region31: #{recurrent_sr_forward.1} parent=1 // pred_check_branch
      %33 = sbr.rel (0) target = $region33
    $region32: #{recurrent_sr_forward.1} parent=1 // pred_region
      _
    $region33: #{recurrent_sr_forward.1} parent=1 // pred_fallthru
      _
    // Predicated region
    $region34: #{recurrent_sr_forward.1} parent=1 // pred_check
      _
    $region35: #{recurrent_sr_forward.1} parent=1 // pred_check_branch
      %35 = sbr.rel (0) target = $region37
    $region36: #{recurrent_sr_forward.1} parent=1 // pred_region
      _
    $region37: #{recurrent_sr_forward.1} parent=1 // pred_fallthru
      _
    // Predicated region
    $region38: #{recurrent_sr_forward.1} parent=1 // pred_check
      _
    $region39: #{recurrent_sr_forward.1} parent=1 // pred_check_branch
      %37 = sbr.rel (0) target = $region41
    $region40: #{recurrent_sr_forward.1} parent=1 // pred_region
      _
    $region41: #{recurrent_sr_forward.1} parent=1 // pred_fallthru
      _
    %v38 = vld [vmem:[%s0] sm:$0xff]
    %v39 = vld [vmem:[%s0 + $0x8] sm:$0xff]
    %v40 = vld [vmem:[%s0 + $0x10] sm:$0xff]
    %v41 = vld [vmem:[%s0 + $0x18] sm:$0xff]
    %v42 = vld [vmem:[%s0 + $0x20] sm:$0xff]
    %v43 = vld [vmem:[%s0 + $0x28] sm:$0xff]
    %v44 = vld [vmem:[%s0 + $0x30] sm:$0xff]
    %v45 = vld [vmem:[%s0 + $0x38] sm:$0xff]
    %v46 = vld [vmem:[%s1] sm:$0xff]
    %v47 = vld [vmem:[%s1 + $0x8] sm:$0xff]
    %v48 = vld [vmem:[%s2] sm:$0x1]
    %v50 = vlaneseq
    %v51 = vshrl.u32 %v50, 7
    %v52 = vsub.s32 0, %v51
    %v53 = vrot.slane %v48, %v52
    %vm55 = vcmask 130048
    %v57 = vsel %vm55, %v38, 0
    %v60 = vsel %vm55, %v39, 0
    %v63 = vsel %vm55, %v40, 0
    %v66 = vsel %vm55, %v41, 0
    %v69 = vsel %vm55, %v42, 0
    %v72 = vsel %vm55, %v43, 0
    %v75 = vsel %vm55, %v44, 0
    %v78 = vsel %vm55, %v45, 0
    %80 = vmatprep.subr.mxu0 0.0
    %81 = vmatpush1.msra.mxu0 %v46
    %82 = vmatprep.subr.mxu0 0.0
    %83 = vmatpush1.msra.mxu0 %v47
    %84 = vmatprep.subr.mxu0 0.0
    %85 = vmatpush1.msra.mxu0 0.0
    %86 = vmatprep.subr.mxu0 0.0
    %87 = vmatpush1.msra.mxu0 0.0
    %88 = vmatprep.subr.mxu0 0.0
    %89 = vmatpush1.msra.mxu0 0.0
    %90 = vmatprep.subr.mxu0 0.0
    %91 = vmatpush1.msra.mxu0 0.0
    %92 = vmatprep.subr.mxu0 0.0
    %93 = vmatpush1.msra.mxu0 0.0
    %94 = vmatprep.subr.mxu0 0.0
    %95 = vmatpush1.msra.mxu0 0.0
    %96 = vmatprep.subr.mxu0 0.0
    %97 = vmatpush1.msra.mxu0 0.0
    %98 = vmatprep.subr.mxu0 0.0
    %99 = vmatpush1.msra.mxu0 0.0
    %100 = vmatprep.subr.mxu0 0.0
    %101 = vmatpush1.msra.mxu0 0.0
    %102 = vmatprep.subr.mxu0 0.0
    %103 = vmatpush1.msra.mxu0 0.0
    %104 = vmatprep.subr.mxu0 0.0
    %105 = vmatpush1.msra.mxu0 0.0
    %106 = vmatprep.subr.mxu0 0.0
    %107 = vmatpush1.msra.mxu0 0.0
    %108 = vmatprep.subr.mxu0 0.0
    %109 = vmatpush1.msra.mxu0 0.0
    %110 = vmatprep.subr.mxu0 0.0
    %111 = vmatpush1.msra.mxu0 0.0
    %112 = vmatprep.subr.mxu0 0.0
    %113 = vmatpush1.msra.mxu0 0.0
    %114 = vmatprep.subr.mxu0 0.0
    %115 = vmatpush1.msra.mxu0 0.0
    %116 = vmatprep.subr.mxu0 0.0
    %117 = vmatpush1.msra.mxu0 0.0
    %118 = vmatprep.subr.mxu0 0.0
    %119 = vmatpush1.msra.mxu0 0.0
    %120 = vmatprep.subr.mxu0 0.0
    %121 = vmatpush1.msra.mxu0 0.0
    %122 = vmatprep.subr.mxu0 0.0
    %123 = vmatpush1.msra.mxu0 0.0
    %124 = vmatprep.subr.mxu0 0.0
    %125 = vmatpush1.msra.mxu0 0.0
    %126 = vmatprep.subr.mxu0 0.0
    %127 = vmatpush1.msra.mxu0 0.0
    %128 = vmatprep.subr.mxu0 0.0
    %129 = vmatpush1.msra.mxu0 0.0
    %130 = vmatprep.subr.mxu0 0.0
    %131 = vmatpush1.msra.mxu0 0.0
    %132 = vmatprep.subr.mxu0 0.0
    %133 = vmatpush1.msra.mxu0 0.0
    %134 = vmatprep.subr.mxu0 0.0
    %135 = vmatpush1.msra.mxu0 0.0
    %136 = vmatprep.subr.mxu0 0.0
    %137 = vmatpush1.msra.mxu0 0.0
    %138 = vmatprep.subr.mxu0 0.0
    %139 = vmatpush1.msra.mxu0 0.0
    %140 = vmatprep.subr.mxu0 0.0
    %141 = vmatpush1.msra.mxu0 0.0
    %142 = vmatprep.subr.mxu0 0.0
    %143 = vmatpush1.msra.mxu0 0.0
    %144 = vmatprep.mubr.f32.mxu0 0.0
    %145 = vmatmul.mubr.f32.gmra.mrb[0].mxu0 %v57
    %v146 = vpop.f32.mrb[0].mxu0
    %v147 = vadd.f32 %v53, %v146
    %v148 = vpop.f32.mrb[0].mxu0
    %149 = vmatprep.mubr.f32.mxu0 0.0
    %150 = vmatmul.mubr.f32.gmra.mrb[0].mxu0 %v60
    %v151 = vpop.f32.mrb[0].mxu0
    %v152 = vadd.f32 %v53, %v151
    %v153 = vpop.f32.mrb[0].mxu0
    %154 = vmatprep.mubr.f32.mxu0 0.0
    %155 = vmatmul.mubr.f32.gmra.mrb[0].mxu0 %v63
    %v156 = vpop.f32.mrb[0].mxu0
    %v157 = vadd.f32 %v53, %v156
    %v158 = vpop.f32.mrb[0].mxu0
    %159 = vmatprep.mubr.f32.mxu0 0.0
    %160 = vmatmul.mubr.f32.gmra.mrb[0].mxu0 %v66
    %v161 = vpop.f32.mrb[0].mxu0
    %v162 = vadd.f32 %v53, %v161
    %v163 = vpop.f32.mrb[0].mxu0
    %164 = vmatprep.mubr.f32.mxu0 0.0
    %165 = vmatmul.mubr.f32.gmra.mrb[0].mxu0 %v69
    %v166 = vpop.f32.mrb[0].mxu0
    %v167 = vadd.f32 %v53, %v166
    %v168 = vpop.f32.mrb[0].mxu0
    %169 = vmatprep.mubr.f32.mxu0 0.0
    %170 = vmatmul.mubr.f32.gmra.mrb[0].mxu0 %v72
    %v171 = vpop.f32.mrb[0].mxu0
    %v172 = vadd.f32 %v53, %v171
    %v173 = vpop.f32.mrb[0].mxu0
    %174 = vmatprep.mubr.f32.mxu0 0.0
    %175 = vmatmul.mubr.f32.gmra.mrb[0].mxu0 %v75
    %v176 = vpop.f32.mrb[0].mxu0
    %v177 = vadd.f32 %v53, %v176
    %v178 = vpop.f32.mrb[0].mxu0
    %179 = vmatprep.mubr.f32.mxu0 0.0
    %180 = vmatmul.mubr.f32.gmra.mrb[0].mxu0 %v78
    %v181 = vpop.f32.mrb[0].mxu0
    %v182 = vadd.f32 %v53, %v181
    %v183 = vpop.f32.mrb[0].mxu0
    %184 = vdwg.mxu0
    %v185 = vmax.f32 %v147, 0.0
    %v186 = vmax.f32 %v152, 0.0
    %v187 = vmax.f32 %v157, 0.0
    %v188 = vmax.f32 %v162, 0.0
    %v189 = vmax.f32 %v167, 0.0
    %v190 = vmax.f32 %v172, 0.0
    %v191 = vmax.f32 %v177, 0.0
    %v192 = vmax.f32 %v182, 0.0
    %vm193 = vcmask 261120
    %194 = vst.msk [vmem:[#allocation2] sm:$0xff] %vm193, %v185
    %195 = vst.msk [vmem:[#allocation2 + $0x8] sm:$0xff] %vm193, %v186
    %196 = vst.msk [vmem:[#allocation2 + $0x10] sm:$0xff] %vm193, %v187
    %197 = vst.msk [vmem:[#allocation2 + $0x18] sm:$0xff] %vm193, %v188
    %198 = vst.msk [vmem:[#allocation2 + $0x20] sm:$0xff] %vm193, %v189
    %199 = vst.msk [vmem:[#allocation2 + $0x28] sm:$0xff] %vm193, %v190
    %200 = vst.msk [vmem:[#allocation2 + $0x30] sm:$0xff] %vm193, %v191
    %201 = vst.msk [vmem:[#allocation2 + $0x38] sm:$0xff] %vm193, %v192
    %v202 = vld [vmem:[%s3] sm:$0xff]
    %v203 = vld [vmem:[%s3 + $0x8] sm:$0xff]
    %v204 = vld [vmem:[%s3 + $0x10] sm:$0xff]
    %v205 = vld [vmem:[%s3 + $0x18] sm:$0xff]
    %v206 = vld [vmem:[%s4] sm:$0xff]
    %v207 = vld [vmem:[%s4 + $0x8] sm:$0xff]
    %v208 = vld [vmem:[%s4 + $0x10] sm:$0xff]
    %v209 = vld [vmem:[%s4 + $0x18] sm:$0xff]
    %v210 = vld [vmem:[%s5] sm:$0x1]
    %v212 = vlaneseq
    %v213 = vshrl.u32 %v212, 7
    %v214 = vsub.s32 0, %v213
    %v215 = vrot.slane %v210, %v214
    %v217 = vld [vmem:[%s6] sm:$0x1]
    %v219 = vlaneseq
    %v220 = vshrl.u32 %v219, 7
    %v221 = vsub.s32 0, %v220
    %v222 = vrot.slane %v217, %v221
    %v223 = vld [vmem:[#allocation2] sm:$0xff]
    %v225 = vsel %vm193, %v223, 0
    %227 = vmatprep.subr.mxu0 0.0
    %228 = vmatpush1.msra.mxu0 %v202
    %229 = vmatprep.subr.mxu0 0.0
    %230 = vmatpush1.msra.mxu0 %v203
    %231 = vmatprep.subr.mxu0 0.0
    %232 = vmatpush1.msra.mxu0 %v204
    %233 = vmatprep.subr.mxu0 0.0
    %234 = vmatpush1.msra.mxu0 %v205
    %235 = vmatprep.subr.mxu0 0.0
    %236 = vmatpush1.msra.mxu0 0.0
    %237 = vmatprep.subr.mxu0 0.0
    %238 = vmatpush1.msra.mxu0 0.0
    %239 = vmatprep.subr.mxu0 0.0
    %240 = vmatpush1.msra.mxu0 0.0
    %241 = vmatprep.subr.mxu0 0.0
    %242 = vmatpush1.msra.mxu0 0.0
    %243 = vmatprep.subr.mxu0 0.0
    %244 = vmatpush1.msra.mxu0 0.0
    %245 = vmatprep.subr.mxu0 0.0
    %246 = vmatpush1.msra.mxu0 0.0
    %247 = vmatprep.subr.mxu0 0.0
    %248 = vmatpush1.msra.mxu0 0.0
    %249 = vmatprep.subr.mxu0 0.0
    %250 = vmatpush1.msra.mxu0 0.0
    %251 = vmatprep.subr.mxu0 0.0
    %252 = vmatpush1.msra.mxu0 0.0
    %253 = vmatprep.subr.mxu0 0.0
    %254 = vmatpush1.msra.mxu0 0.0
    %255 = vmatprep.subr.mxu0 0.0
    %256 = vmatpush1.msra.mxu0 0.0
    %257 = vmatprep.subr.mxu0 0.0
    %258 = vmatpush1.msra.mxu0 0.0
    %259 = vmatprep.subr.mxu0 0.0
    %260 = vmatpush1.msra.mxu0 0.0
    %261 = vmatprep.subr.mxu0 0.0
    %262 = vmatpush1.msra.mxu0 0.0
    %263 = vmatprep.subr.mxu0 0.0
    %264 = vmatpush1.msra.mxu0 0.0
    %265 = vmatprep.subr.mxu0 0.0
    %266 = vmatpush1.msra.mxu0 0.0
    %267 = vmatprep.subr.mxu0 0.0
    %268 = vmatpush1.msra.mxu0 0.0
    %269 = vmatprep.subr.mxu0 0.0
    %270 = vmatpush1.msra.mxu0 0.0
    %271 = vmatprep.subr.mxu0 0.0
    %272 = vmatpush1.msra.mxu0 0.0
    %273 = vmatprep.subr.mxu0 0.0
    %274 = vmatpush1.msra.mxu0 0.0
    %275 = vmatprep.subr.mxu0 0.0
    %276 = vmatpush1.msra.mxu0 0.0
    %277 = vmatprep.subr.mxu0 0.0
    %278 = vmatpush1.msra.mxu0 0.0
    %279 = vmatprep.subr.mxu0 0.0
    %280 = vmatpush1.msra.mxu0 0.0
    %281 = vmatprep.subr.mxu0 0.0
    %282 = vmatpush1.msra.mxu0 0.0
    %283 = vmatprep.subr.mxu0 0.0
    %284 = vmatpush1.msra.mxu0 0.0
    %285 = vmatprep.subr.mxu0 0.0
    %286 = vmatpush1.msra.mxu0 0.0
    %287 = vmatprep.subr.mxu0 0.0
    %288 = vmatpush1.msra.mxu0 0.0
    %289 = vmatprep.subr.mxu0 0.0
    %290 = vmatpush1.msra.mxu0 0.0
    %291 = vmatprep.mubr.f32.mxu0 0.0
    %292 = vmatmul.mubr.f32.gmra.mrb[0].mxu0 %v225
    %v293 = vpop.f32.mrb[0].mxu0
    %v294 = vadd.f32 %v215, %v293
    %v295 = vpop.f32.mrb[0].mxu0
    %296 = vdwg.mxu0
    %v298 = vsel %vm193, 0.0, 0
    %300 = vmatprep.subr.mxu0 0.0
    %301 = vmatpush1.msra.mxu0 %v206
    %302 = vmatprep.subr.mxu0 0.0
    %303 = vmatpush1.msra.mxu0 %v207
    %304 = vmatprep.subr.mxu0 0.0
    %305 = vmatpush1.msra.mxu0 %v208
    %306 = vmatprep.subr.mxu0 0.0
    %307 = vmatpush1.msra.mxu0 %v209
    %308 = vmatprep.subr.mxu0 0.0
    %309 = vmatpush1.msra.mxu0 0.0
    %310 = vmatprep.subr.mxu0 0.0
    %311 = vmatpush1.msra.mxu0 0.0
    %312 = vmatprep.subr.mxu0 0.0
    %313 = vmatpush1.msra.mxu0 0.0
    %314 = vmatprep.subr.mxu0 0.0
    %315 = vmatpush1.msra.mxu0 0.0
    %316 = vmatprep.subr.mxu0 0.0
    %317 = vmatpush1.msra.mxu0 0.0
    %318 = vmatprep.subr.mxu0 0.0
    %319 = vmatpush1.msra.mxu0 0.0
    %320 = vmatprep.subr.mxu0 0.0
    %321 = vmatpush1.msra.mxu0 0.0
    %322 = vmatprep.subr.mxu0 0.0
    %323 = vmatpush1.msra.mxu0 0.0
    %324 = vmatprep.subr.mxu0 0.0
    %325 = vmatpush1.msra.mxu0 0.0
    %326 = vmatprep.subr.mxu0 0.0
    %327 = vmatpush1.msra.mxu0 0.0
    %328 = vmatprep.subr.mxu0 0.0
    %329 = vmatpush1.msra.mxu0 0.0
    %330 = vmatprep.subr.mxu0 0.0
    %331 = vmatpush1.msra.mxu0 0.0
    %332 = vmatprep.subr.mxu0 0.0
    %333 = vmatpush1.msra.mxu0 0.0
    %334 = vmatprep.subr.mxu0 0.0
    %335 = vmatpush1.msra.mxu0 0.0
    %336 = vmatprep.subr.mxu0 0.0
    %337 = vmatpush1.msra.mxu0 0.0
    %338 = vmatprep.subr.mxu0 0.0
    %339 = vmatpush1.msra.mxu0 0.0
    %340 = vmatprep.subr.mxu0 0.0
    %341 = vmatpush1.msra.mxu0 0.0
    %342 = vmatprep.subr.mxu0 0.0
    %343 = vmatpush1.msra.mxu0 0.0
    %344 = vmatprep.subr.mxu0 0.0
    %345 = vmatpush1.msra.mxu0 0.0
    %346 = vmatprep.subr.mxu0 0.0
    %347 = vmatpush1.msra.mxu0 0.0
    %348 = vmatprep.subr.mxu0 0.0
    %349 = vmatpush1.msra.mxu0 0.0
    %350 = vmatprep.subr.mxu0 0.0
    %351 = vmatpush1.msra.mxu0 0.0
    %352 = vmatprep.subr.mxu0 0.0
    %353 = vmatpush1.msra.mxu0 0.0
    %354 = vmatprep.subr.mxu0 0.0
    %355 = vmatpush1.msra.mxu0 0.0
    %356 = vmatprep.subr.mxu0 0.0
    %357 = vmatpush1.msra.mxu0 0.0
    %358 = vmatprep.subr.mxu0 0.0
    %359 = vmatpush1.msra.mxu0 0.0
    %360 = vmatprep.subr.mxu0 0.0
    %361 = vmatpush1.msra.mxu0 0.0
    %362 = vmatprep.subr.mxu0 0.0
    %363 = vmatpush1.msra.mxu0 0.0
    %364 = vmatprep.mubr.f32.mxu0 0.0
    %365 = vmatmul.mubr.f32.gmra.mrb[0].mxu0 %v298
    %v366 = vpop.f32.mrb[0].mxu0
    %v367 = vadd.f32 0.0, %v366
    %v368 = vpop.f32.mrb[0].mxu0
    %369 = vdwg.mxu0
    %v370 = vadd.f32 %v294, %v367
    %v371 = vxor.u32 %v370, 2147483648
    %v372 = vmul.f32 %v371, 1.442695
    %v373 = vpow.pop %v372
    %v374 = vadd.f32 %v373, 1.0
    %v375 = vrcp.pop %v374
    %v376 = vmul.f32 1.0, %v375
    %377 = vrot.lane.b32.xlu0 %v222, 64
    %v378 = vpop.permute.xlu0 %377
    %v380 = vadd.f32 %v367, %v378
    %382 = vrot.lane.b32.xlu0 %v380, 64
    %v383 = vpop.permute.xlu0 %382
    %v385 = vmul.f32 %v376, %v383
    %387 = vrot.lane.b32.xlu0 %v385, 64
    %v388 = vpop.permute.xlu0 %387
    %v390 = vadd.f32 %v294, %v388
    %v391 = vtanh.pop %v390
    %v392 = vsub.f32 1.0, %v376
    %394 = vrot.lane.b32.xlu0 %v391, 96
    %v395 = vpop.permute.xlu0 %394
    %v397 = vmul.f32 %v392, %v395
    %v398 = vmul.f32 %v376, 0.0
    %v399 = vadd.f32 %v397, %v398
    %401 = vrot.lane.b32.xlu0 %v399, 96
    %v402 = vpop.permute.xlu0 %401
    %404 = vst.msk [vmem:[#allocation3] sm:$0xff] %vm193, %v402
    %s405 = scalar_lea.vmem [#allocation2], 8
    %v406 = vld [vmem:[%s405] sm:$0xff]
    %v408 = vsel %vm193, %v406, 0
    %410 = vmatprep.subr.mxu0 0.0
    %411 = vmatpush1.msra.mxu0 %v202
    %412 = vmatprep.subr.mxu0 0.0
    %413 = vmatpush1.msra.mxu0 %v203
    %414 = vmatprep.subr.mxu0 0.0
    %415 = vmatpush1.msra.mxu0 %v204
    %416 = vmatprep.subr.mxu0 0.0
    %417 = vmatpush1.msra.mxu0 %v205
    %418 = vmatprep.subr.mxu0 0.0
    %419 = vmatpush1.msra.mxu0 0.0
    %420 = vmatprep.subr.mxu0 0.0
    %421 = vmatpush1.msra.mxu0 0.0
    %422 = vmatprep.subr.mxu0 0.0
    %423 = vmatpush1.msra.mxu0 0.0
    %424 = vmatprep.subr.mxu0 0.0
    %425 = vmatpush1.msra.mxu0 0.0
    %426 = vmatprep.subr.mxu0 0.0
    %427 = vmatpush1.msra.mxu0 0.0
    %428 = vmatprep.subr.mxu0 0.0
    %429 = vmatpush1.msra.mxu0 0.0
    %430 = vmatprep.subr.mxu0 0.0
    %431 = vmatpush1.msra.mxu0 0.0
    %432 = vmatprep.subr.mxu0 0.0
    %433 = vmatpush1.msra.mxu0 0.0
    %434 = vmatprep.subr.mxu0 0.0
    %435 = vmatpush1.msra.mxu0 0.0
    %436 = vmatprep.subr.mxu0 0.0
    %437 = vmatpush1.msra.mxu0 0.0
    %438 = vmatprep.subr.mxu0 0.0
    %439 = vmatpush1.msra.mxu0 0.0
    %440 = vmatprep.subr.mxu0 0.0
    %441 = vmatpush1.msra.mxu0 0.0
    %442 = vmatprep.subr.mxu0 0.0
    %443 = vmatpush1.msra.mxu0 0.0
    %444 = vmatprep.subr.mxu0 0.0
    %445 = vmatpush1.msra.mxu0 0.0
    %446 = vmatprep.subr.mxu0 0.0
    %447 = vmatpush1.msra.mxu0 0.0
    %448 = vmatprep.subr.mxu0 0.0
    %449 = vmatpush1.msra.mxu0 0.0
    %450 = vmatprep.subr.mxu0 0.0
    %451 = vmatpush1.msra.mxu0 0.0
    %452 = vmatprep.subr.mxu0 0.0
    %453 = vmatpush1.msra.mxu0 0.0
    %454 = vmatprep.subr.mxu0 0.0
    %455 = vmatpush1.msra.mxu0 0.0
    %456 = vmatprep.subr.mxu0 0.0
    %457 = vmatpush1.msra.mxu0 0.0
    %458 = vmatprep.subr.mxu0 0.0
    %459 = vmatpush1.msra.mxu0 0.0
    %460 = vmatprep.subr.mxu0 0.0
    %461 = vmatpush1.msra.mxu0 0.0
    %462 = vmatprep.subr.mxu0 0.0
    %463 = vmatpush1.msra.mxu0 0.0
    %464 = vmatprep.subr.mxu0 0.0
    %465 = vmatpush1.msra.mxu0 0.0
    %466 = vmatprep.subr.mxu0 0.0
    %467 = vmatpush1.msra.mxu0 0.0
    %468 = vmatprep.subr.mxu0 0.0
    %469 = vmatpush1.msra.mxu0 0.0
    %470 = vmatprep.subr.mxu0 0.0
    %471 = vmatpush1.msra.mxu0 0.0
    %472 = vmatprep.subr.mxu0 0.0
    %473 = vmatpush1.msra.mxu0 0.0
    %474 = vmatprep.mubr.f32.mxu0 0.0
    %475 = vmatmul.mubr.f32.gmra.mrb[0].mxu0 %v408
    %v476 = vpop.f32.mrb[0].mxu0
    %v477 = vadd.f32 %v215, %v476
    %v478 = vpop.f32.mrb[0].mxu0
    %479 = vdwg.mxu0
    %v480 = vsel %vm193, %v402, 0
    %482 = vmatprep.subr.mxu0 0.0
    %483 = vmatpush1.msra.mxu0 %v206
    %484 = vmatprep.subr.mxu0 0.0
    %485 = vmatpush1.msra.mxu0 %v207
    %486 = vmatprep.subr.mxu0 0.0
    %487 = vmatpush1.msra.mxu0 %v208
    %488 = vmatprep.subr.mxu0 0.0
    %489 = vmatpush1.msra.mxu0 %v209
    %490 = vmatprep.subr.mxu0 0.0
    %491 = vmatpush1.msra.mxu0 0.0
    %492 = vmatprep.subr.mxu0 0.0
    %493 = vmatpush1.msra.mxu0 0.0
    %494 = vmatprep.subr.mxu0 0.0
    %495 = vmatpush1.msra.mxu0 0.0
    %496 = vmatprep.subr.mxu0 0.0
    %497 = vmatpush1.msra.mxu0 0.0
    %498 = vmatprep.subr.mxu0 0.0
    %499 = vmatpush1.msra.mxu0 0.0
    %500 = vmatprep.subr.mxu0 0.0
    %501 = vmatpush1.msra.mxu0 0.0
    %502 = vmatprep.subr.mxu0 0.0
    %503 = vmatpush1.msra.mxu0 0.0
    %504 = vmatprep.subr.mxu0 0.0
    %505 = vmatpush1.msra.mxu0 0.0
    %506 = vmatprep.subr.mxu0 0.0
    %507 = vmatpush1.msra.mxu0 0.0
    %508 = vmatprep.subr.mxu0 0.0
    %509 = vmatpush1.msra.mxu0 0.0
    %510 = vmatprep.subr.mxu0 0.0
    %511 = vmatpush1.msra.mxu0 0.0
    %512 = vmatprep.subr.mxu0 0.0
    %513 = vmatpush1.msra.mxu0 0.0
    %514 = vmatprep.subr.mxu0 0.0
    %515 = vmatpush1.msra.mxu0 0.0
    %516 = vmatprep.subr.mxu0 0.0
    %517 = vmatpush1.msra.mxu0 0.0
    %518 = vmatprep.subr.mxu0 0.0
    %519 = vmatpush1.msra.mxu0 0.0
    %520 = vmatprep.subr.mxu0 0.0
    %521 = vmatpush1.msra.mxu0 0.0
    %522 = vmatprep.subr.mxu0 0.0
    %523 = vmatpush1.msra.mxu0 0.0
    %524 = vmatprep.subr.mxu0 0.0
    %525 = vmatpush1.msra.mxu0 0.0
    %526 = vmatprep.subr.mxu0 0.0
    %527 = vmatpush1.msra.mxu0 0.0
    %528 = vmatprep.subr.mxu0 0.0
    %529 = vmatpush1.msra.mxu0 0.0
    %530 = vmatprep.subr.mxu0 0.0
    %531 = vmatpush1.msra.mxu0 0.0
    %532 = vmatprep.subr.mxu0 0.0
    %533 = vmatpush1.msra.mxu0 0.0
    %534 = vmatprep.subr.mxu0 0.0
    %535 = vmatpush1.msra.mxu0 0.0
    %536 = vmatprep.subr.mxu0 0.0
    %537 = vmatpush1.msra.mxu0 0.0
    %538 = vmatprep.subr.mxu0 0.0
    %539 = vmatpush1.msra.mxu0 0.0
    %540 = vmatprep.subr.mxu0 0.0
    %541 = vmatpush1.msra.mxu0 0.0
    %542 = vmatprep.subr.mxu0 0.0
    %543 = vmatpush1.msra.mxu0 0.0
    %544 = vmatprep.subr.mxu0 0.0
    %545 = vmatpush1.msra.mxu0 0.0
    %546 = vmatprep.mubr.f32.mxu0 0.0
    %547 = vmatmul.mubr.f32.gmra.mrb[0].mxu0 %v480
    %v548 = vpop.f32.mrb[0].mxu0
    %v549 = vadd.f32 0.0, %v548
    %v550 = vpop.f32.mrb[0].mxu0
    %551 = vdwg.mxu0
    %v552 = vadd.f32 %v477, %v549
    %v553 = vxor.u32 %v552, 2147483648
    %v554 = vmul.f32 %v553, 1.442695
    %v555 = vpow.pop %v554
    %v556 = vadd.f32 %v555, 1.0
    %v557 = vrcp.pop %v556
    %v558 = vmul.f32 1.0, %v557
    %v559 = vadd.f32 %v549, %v378
    %561 = vrot.lane.b32.xlu0 %v559, 64
    %v562 = vpop.permute.xlu0 %561
    %v564 = vmul.f32 %v558, %v562
    %566 = vrot.lane.b32.xlu0 %v564, 64
    %v567 = vpop.permute.xlu0 %566
    %v569 = vadd.f32 %v477, %v567
    %v570 = vtanh.pop %v569
    %v571 = vsub.f32 1.0, %v558
    %573 = vrot.lane.b32.xlu0 %v570, 96
    %v574 = vpop.permute.xlu0 %573
    %v576 = vmul.f32 %v571, %v574
    %v577 = vmul.f32 %v558, %v399
    %v578 = vadd.f32 %v576, %v577
    %580 = vrot.lane.b32.xlu0 %v578, 96
    %v581 = vpop.permute.xlu0 %580
    %s583 = scalar_lea.vmem [#allocation3], 8
    %584 = vst.msk [vmem:[%s583] sm:$0xff] %vm193, %v581
    %s585 = scalar_lea.vmem [#allocation2], 16
    %v586 = vld [vmem:[%s585] sm:$0xff]
    %v588 = vsel %vm193, %v586, 0
    %590 = vmatprep.subr.mxu0 0.0
    %591 = vmatpush1.msra.mxu0 %v202
    %592 = vmatprep.subr.mxu0 0.0
    %593 = vmatpush1.msra.mxu0 %v203
    %594 = vmatprep.subr.mxu0 0.0
    %595 = vmatpush1.msra.mxu0 %v204
    %596 = vmatprep.subr.mxu0 0.0
    %597 = vmatpush1.msra.mxu0 %v205
    %598 = vmatprep.subr.mxu0 0.0
    %599 = vmatpush1.msra.mxu0 0.0
    %600 = vmatprep.subr.mxu0 0.0
    %601 = vmatpush1.msra.mxu0 0.0
    %602 = vmatprep.subr.mxu0 0.0
    %603 = vmatpush1.msra.mxu0 0.0
    %604 = vmatprep.subr.mxu0 0.0
    %605 = vmatpush1.msra.mxu0 0.0
    %606 = vmatprep.subr.mxu0 0.0
    %607 = vmatpush1.msra.mxu0 0.0
    %608 = vmatprep.subr.mxu0 0.0
    %609 = vmatpush1.msra.mxu0 0.0
    %610 = vmatprep.subr.mxu0 0.0
    %611 = vmatpush1.msra.mxu0 0.0
    %612 = vmatprep.subr.mxu0 0.0
    %613 = vmatpush1.msra.mxu0 0.0
    %614 = vmatprep.subr.mxu0 0.0
    %615 = vmatpush1.msra.mxu0 0.0
    %616 = vmatprep.subr.mxu0 0.0
    %617 = vmatpush1.msra.mxu0 0.0
    %618 = vmatprep.subr.mxu0 0.0
    %619 = vmatpush1.msra.mxu0 0.0
    %620 = vmatprep.subr.mxu0 0.0
    %621 = vmatpush1.msra.mxu0 0.0
    %622 = vmatprep.subr.mxu0 0.0
    %623 = vmatpush1.msra.mxu0 0.0
    %624 = vmatprep.subr.mxu0 0.0
    %625 = vmatpush1.msra.mxu0 0.0
    %626 = vmatprep.subr.mxu0 0.0
    %627 = vmatpush1.msra.mxu0 0.0
    %628 = vmatprep.subr.mxu0 0.0
    %629 = vmatpush1.msra.mxu0 0.0
    %630 = vmatprep.subr.mxu0 0.0
    %631 = vmatpush1.msra.mxu0 0.0
    %632 = vmatprep.subr.mxu0 0.0
    %633 = vmatpush1.msra.mxu0 0.0
    %634 = vmatprep.subr.mxu0 0.0
    %635 = vmatpush1.msra.mxu0 0.0
    %636 = vmatprep.subr.mxu0 0.0
    %637 = vmatpush1.msra.mxu0 0.0
    %638 = vmatprep.subr.mxu0 0.0
    %639 = vmatpush1.msra.mxu0 0.0
    %640 = vmatprep.subr.mxu0 0.0
    %641 = vmatpush1.msra.mxu0 0.0
    %642 = vmatprep.subr.mxu0 0.0
    %643 = vmatpush1.msra.mxu0 0.0
    %644 = vmatprep.subr.mxu0 0.0
    %645 = vmatpush1.msra.mxu0 0.0
    %646 = vmatprep.subr.mxu0 0.0
    %647 = vmatpush1.msra.mxu0 0.0
    %648 = vmatprep.subr.mxu0 0.0
    %649 = vmatpush1.msra.mxu0 0.0
    %650 = vmatprep.subr.mxu0 0.0
    %651 = vmatpush1.msra.mxu0 0.0
    %652 = vmatprep.subr.mxu0 0.0
    %653 = vmatpush1.msra.mxu0 0.0
    %654 = vmatprep.mubr.f32.mxu0 0.0
    %655 = vmatmul.mubr.f32.gmra.mrb[0].mxu0 %v588
    %v656 = vpop.f32.mrb[0].mxu0
    %v657 = vadd.f32 %v215, %v656
    %v658 = vpop.f32.mrb[0].mxu0
    %659 = vdwg.mxu0
    %v660 = vsel %vm193, %v581, 0
    %662 = vmatprep.subr.mxu0 0.0
    %663 = vmatpush1.msra.mxu0 %v206
    %664 = vmatprep.subr.mxu0 0.0
    %665 = vmatpush1.msra.mxu0 %v207
    %666 = vmatprep.subr.mxu0 0.0
    %667 = vmatpush1.msra.mxu0 %v208
    %668 = vmatprep.subr.mxu0 0.0
    %669 = vmatpush1.msra.mxu0 %v209
    %670 = vmatprep.subr.mxu0 0.0
    %671 = vmatpush1.msra.mxu0 0.0
    %672 = vmatprep.subr.mxu0 0.0
    %673 = vmatpush1.msra.mxu0 0.0
    %674 = vmatprep.subr.mxu0 0.0
    %675 = vmatpush1.msra.mxu0 0.0
    %676 = vmatprep.subr.mxu0 0.0
    %677 = vmatpush1.msra.mxu0 0.0
    %678 = vmatprep.subr.mxu0 0.0
    %679 = vmatpush1.msra.mxu0 0.0
    %680 = vmatprep.subr.mxu0 0.0
    %681 = vmatpush1.msra.mxu0 0.0
    %682 = vmatprep.subr.mxu0 0.0
    %683 = vmatpush1.msra.mxu0 0.0
    %684 = vmatprep.subr.mxu0 0.0
    %685 = vmatpush1.msra.mxu0 0.0
    %686 = vmatprep.subr.mxu0 0.0
    %687 = vmatpush1.msra.mxu0 0.0
    %688 = vmatprep.subr.mxu0 0.0
    %689 = vmatpush1.msra.mxu0 0.0
    %690 = vmatprep.subr.mxu0 0.0
    %691 = vmatpush1.msra.mxu0 0.0
    %692 = vmatprep.subr.mxu0 0.0
    %693 = vmatpush1.msra.mxu0 0.0
    %694 = vmatprep.subr.mxu0 0.0
    %695 = vmatpush1.msra.mxu0 0.0
    %696 = vmatprep.subr.mxu0 0.0
    %697 = vmatpush1.msra.mxu0 0.0
    %698 = vmatprep.subr.mxu0 0.0
    %699 = vmatpush1.msra.mxu0 0.0
    %700 = vmatprep.subr.mxu0 0.0
    %701 = vmatpush1.msra.mxu0 0.0
    %702 = vmatprep.subr.mxu0 0.0
    %703 = vmatpush1.msra.mxu0 0.0
    %704 = vmatprep.subr.mxu0 0.0
    %705 = vmatpush1.msra.mxu0 0.0
    %706 = vmatprep.subr.mxu0 0.0
    %707 = vmatpush1.msra.mxu0 0.0
    %708 = vmatprep.subr.mxu0 0.0
    %709 = vmatpush1.msra.mxu0 0.0
    %710 = vmatprep.subr.mxu0 0.0
    %711 = vmatpush1.msra.mxu0 0.0
    %712 = vmatprep.subr.mxu0 0.0
    %713 = vmatpush1.msra.mxu0 0.0
    %714 = vmatprep.subr.mxu0 0.0
    %715 = vmatpush1.msra.mxu0 0.0
    %716 = vmatprep.subr.mxu0 0.0
    %717 = vmatpush1.msra.mxu0 0.0
    %718 = vmatprep.subr.mxu0 0.0
    %719 = vmatpush1.msra.mxu0 0.0
    %720 = vmatprep.subr.mxu0 0.0
    %721 = vmatpush1.msra.mxu0 0.0
    %722 = vmatprep.subr.mxu0 0.0
    %723 = vmatpush1.msra.mxu0 0.0
    %724 = vmatprep.subr.mxu0 0.0
    %725 = vmatpush1.msra.mxu0 0.0
    %726 = vmatprep.mubr.f32.mxu0 0.0
    %727 = vmatmul.mubr.f32.gmra.mrb[0].mxu0 %v660
    %v728 = vpop.f32.mrb[0].mxu0
    %v729 = vadd.f32 0.0, %v728
    %v730 = vpop.f32.mrb[0].mxu0
    %731 = vdwg.mxu0
    %v732 = vadd.f32 %v657, %v729
    %v733 = vxor.u32 %v732, 2147483648
    %v734 = vmul.f32 %v733, 1.442695
    %v735 = vpow.pop %v734
    %v736 = vadd.f32 %v735, 1.0
    %v737 = vrcp.pop %v736
    %v738 = vmul.f32 1.0, %v737
    %v739 = vadd.f32 %v729, %v378
    %741 = vrot.lane.b32.xlu0 %v739, 64
    %v742 = vpop.permute.xlu0 %741
    %v744 = vmul.f32 %v738, %v742
    %746 = vrot.lane.b32.xlu0 %v744, 64
    %v747 = vpop.permute.xlu0 %746
    %v749 = vadd.f32 %v657, %v747
    %v750 = vtanh.pop %v749
    %v751 = vsub.f32 1.0, %v738
    %753 = vrot.lane.b32.xlu0 %v750, 96
    %v754 = vpop.permute.xlu0 %753
    %v756 = vmul.f32 %v751, %v754
    %v757 = vmul.f32 %v738, %v578
    %v758 = vadd.f32 %v756, %v757
    %760 = vrot.lane.b32.xlu0 %v758, 96
    %v761 = vpop.permute.xlu0 %760
    %s763 = scalar_lea.vmem [#allocation3], 16
    %764 = vst.msk [vmem:[%s763] sm:$0xff] %vm193, %v761
    %s765 = scalar_lea.vmem [#allocation2], 24
    %v766 = vld [vmem:[%s765] sm:$0xff]
    %v768 = vsel %vm193, %v766, 0
    %770 = vmatprep.subr.mxu0 0.0
    %771 = vmatpush1.msra.mxu0 %v202
    %772 = vmatprep.subr.mxu0 0.0
    %773 = vmatpush1.msra.mxu0 %v203
    %774 = vmatprep.subr.mxu0 0.0
    %775 = vmatpush1.msra.mxu0 %v204
    %776 = vmatprep.subr.mxu0 0.0
    %777 = vmatpush1.msra.mxu0 %v205
    %778 = vmatprep.subr.mxu0 0.0
    %779 = vmatpush1.msra.mxu0 0.0
    %780 = vmatprep.subr.mxu0 0.0
    %781 = vmatpush1.msra.mxu0 0.0
    %782 = vmatprep.subr.mxu0 0.0
    %783 = vmatpush1.msra.mxu0 0.0
    %784 = vmatprep.subr.mxu0 0.0
    %785 = vmatpush1.msra.mxu0 0.0
    %786 = vmatprep.subr.mxu0 0.0
    %787 = vmatpush1.msra.mxu0 0.0
    %788 = vmatprep.subr.mxu0 0.0
    %789 = vmatpush1.msra.mxu0 0.0
    %790 = vmatprep.subr.mxu0 0.0
    %791 = vmatpush1.msra.mxu0 0.0
    %792 = vmatprep.subr.mxu0 0.0
    %793 = vmatpush1.msra.mxu0 0.0
    %794 = vmatprep.subr.mxu0 0.0
    %795 = vmatpush1.msra.mxu0 0.0
    %796 = vmatprep.subr.mxu0 0.0
    %797 = vmatpush1.msra.mxu0 0.0
    %798 = vmatprep.subr.mxu0 0.0
    %799 = vmatpush1.msra.mxu0 0.0
    %800 = vmatprep.subr.mxu0 0.0
    %801 = vmatpush1.msra.mxu0 0.0
    %802 = vmatprep.subr.mxu0 0.0
    %803 = vmatpush1.msra.mxu0 0.0
    %804 = vmatprep.subr.mxu0 0.0
    %805 = vmatpush1.msra.mxu0 0.0
    %806 = vmatprep.subr.mxu0 0.0
    %807 = vmatpush1.msra.mxu0 0.0
    %808 = vmatprep.subr.mxu0 0.0
    %809 = vmatpush1.msra.mxu0 0.0
    %810 = vmatprep.subr.mxu0 0.0
    %811 = vmatpush1.msra.mxu0 0.0
    %812 = vmatprep.subr.mxu0 0.0
    %813 = vmatpush1.msra.mxu0 0.0
    %814 = vmatprep.subr.mxu0 0.0
    %815 = vmatpush1.msra.mxu0 0.0
    %816 = vmatprep.subr.mxu0 0.0
    %817 = vmatpush1.msra.mxu0 0.0
    %818 = vmatprep.subr.mxu0 0.0
    %819 = vmatpush1.msra.mxu0 0.0
    %820 = vmatprep.subr.mxu0 0.0
    %821 = vmatpush1.msra.mxu0 0.0
    %822 = vmatprep.subr.mxu0 0.0
    %823 = vmatpush1.msra.mxu0 0.0
    %824 = vmatprep.subr.mxu0 0.0
    %825 = vmatpush1.msra.mxu0 0.0
    %826 = vmatprep.subr.mxu0 0.0
    %827 = vmatpush1.msra.mxu0 0.0
    %828 = vmatprep.subr.mxu0 0.0
    %829 = vmatpush1.msra.mxu0 0.0
    %830 = vmatprep.subr.mxu0 0.0
    %831 = vmatpush1.msra.mxu0 0.0
    %832 = vmatprep.subr.mxu0 0.0
    %833 = vmatpush1.msra.mxu0 0.0
    %834 = vmatprep.mubr.f32.mxu0 0.0
    %835 = vmatmul.mubr.f32.gmra.mrb[0].mxu0 %v768
    %v836 = vpop.f32.mrb[0].mxu0
    %v837 = vadd.f32 %v215, %v836
    %v838 = vpop.f32.mrb[0].mxu0
    %839 = vdwg.mxu0
    %v840 = vsel %vm193, %v761, 0
    %842 = vmatprep.subr.mxu0 0.0
    %843 = vmatpush1.msra.mxu0 %v206
    %844 = vmatprep.subr.mxu0 0.0
    %845 = vmatpush1.msra.mxu0 %v207
    %846 = vmatprep.subr.mxu0 0.0
    %847 = vmatpush1.msra.mxu0 %v208
    %848 = vmatprep.subr.mxu0 0.0
    %849 = vmatpush1.msra.mxu0 %v209
    %850 = vmatprep.subr.mxu0 0.0
    %851 = vmatpush1.msra.mxu0 0.0
    %852 = vmatprep.subr.mxu0 0.0
    %853 = vmatpush1.msra.mxu0 0.0
    %854 = vmatprep.subr.mxu0 0.0
    %855 = vmatpush1.msra.mxu0 0.0
    %856 = vmatprep.subr.mxu0 0.0
    %857 = vmatpush1.msra.mxu0 0.0
    %858 = vmatprep.subr.mxu0 0.0
    %859 = vmatpush1.msra.mxu0 0.0
    %860 = vmatprep.subr.mxu0 0.0
    %861 = vmatpush1.msra.mxu0 0.0
    %862 = vmatprep.subr.mxu0 0.0
    %863 = vmatpush1.msra.mxu0 0.0
    %864 = vmatprep.subr.mxu0 0.0
    %865 = vmatpush1.msra.mxu0 0.0
    %866 = vmatprep.subr.mxu0 0.0
    %867 = vmatpush1.msra.mxu0 0.0
    %868 = vmatprep.subr.mxu0 0.0
    %869 = vmatpush1.msra.mxu0 0.0
    %870 = vmatprep.subr.mxu0 0.0
    %871 = vmatpush1.msra.mxu0 0.0
    %872 = vmatprep.subr.mxu0 0.0
    %873 = vmatpush1.msra.mxu0 0.0
    %874 = vmatprep.subr.mxu0 0.0
    %875 = vmatpush1.msra.mxu0 0.0
    %876 = vmatprep.subr.mxu0 0.0
    %877 = vmatpush1.msra.mxu0 0.0
    %878 = vmatprep.subr.mxu0 0.0
    %879 = vmatpush1.msra.mxu0 0.0
    %880 = vmatprep.subr.mxu0 0.0
    %881 = vmatpush1.msra.mxu0 0.0
    %882 = vmatprep.subr.mxu0 0.0
    %883 = vmatpush1.msra.mxu0 0.0
    %884 = vmatprep.subr.mxu0 0.0
    %885 = vmatpush1.msra.mxu0 0.0
    %886 = vmatprep.subr.mxu0 0.0
    %887 = vmatpush1.msra.mxu0 0.0
    %888 = vmatprep.subr.mxu0 0.0
    %889 = vmatpush1.msra.mxu0 0.0
    %890 = vmatprep.subr.mxu0 0.0
    %891 = vmatpush1.msra.mxu0 0.0
    %892 = vmatprep.subr.mxu0 0.0
    %893 = vmatpush1.msra.mxu0 0.0
    %894 = vmatprep.subr.mxu0 0.0
    %895 = vmatpush1.msra.mxu0 0.0
    %896 = vmatprep.subr.mxu0 0.0
    %897 = vmatpush1.msra.mxu0 0.0
    %898 = vmatprep.subr.mxu0 0.0
    %899 = vmatpush1.msra.mxu0 0.0
    %900 = vmatprep.subr.mxu0 0.0
    %901 = vmatpush1.msra.mxu0 0.0
    %902 = vmatprep.subr.mxu0 0.0
    %903 = vmatpush1.msra.mxu0 0.0
    %904 = vmatprep.subr.mxu0 0.0
    %905 = vmatpush1.msra.mxu0 0.0
    %906 = vmatprep.mubr.f32.mxu0 0.0
    %907 = vmatmul.mubr.f32.gmra.mrb[0].mxu0 %v840
    %v908 = vpop.f32.mrb[0].mxu0
    %v909 = vadd.f32 0.0, %v908
    %v910 = vpop.f32.mrb[0].mxu0
    %911 = vdwg.mxu0
    %v912 = vadd.f32 %v837, %v909
    %v913 = vxor.u32 %v912, 2147483648
    %v914 = vmul.f32 %v913, 1.442695
    %v915 = vpow.pop %v914
    %v916 = vadd.f32 %v915, 1.0
    %v917 = vrcp.pop %v916
    %v918 = vmul.f32 1.0, %v917
    %v919 = vadd.f32 %v909, %v378
    %921 = vrot.lane.b32.xlu0 %v919, 64
    %v922 = vpop.permute.xlu0 %921
    %v924 = vmul.f32 %v918, %v922
    %926 = vrot.lane.b32.xlu0 %v924, 64
    %v927 = vpop.permute.xlu0 %926
    %v929 = vadd.f32 %v837, %v927
    %v930 = vtanh.pop %v929
    %v931 = vsub.f32 1.0, %v918
    %933 = vrot.lane.b32.xlu0 %v930, 96
    %v934 = vpop.permute.xlu0 %933
    %v936 = vmul.f32 %v931, %v934
    %v937 = vmul.f32 %v918, %v758
    %v938 = vadd.f32 %v936, %v937
    %940 = vrot.lane.b32.xlu0 %v938, 96
    %v941 = vpop.permute.xlu0 %940
    %s943 = scalar_lea.vmem [#allocation3], 24
    %944 = vst.msk [vmem:[%s943] sm:$0xff] %vm193, %v941
    %s945 = scalar_lea.vmem [#allocation2], 32
    %v946 = vld [vmem:[%s945] sm:$0xff]
    %v948 = vsel %vm193, %v946, 0
    %950 = vmatprep.subr.mxu0 0.0
    %951 = vmatpush1.msra.mxu0 %v202
    %952 = vmatprep.subr.mxu0 0.0
    %953 = vmatpush1.msra.mxu0 %v203
    %954 = vmatprep.subr.mxu0 0.0
    %955 = vmatpush1.msra.mxu0 %v204
    %956 = vmatprep.subr.mxu0 0.0
    %957 = vmatpush1.msra.mxu0 %v205
    %958 = vmatprep.subr.mxu0 0.0
    %959 = vmatpush1.msra.mxu0 0.0
    %960 = vmatprep.subr.mxu0 0.0
    %961 = vmatpush1.msra.mxu0 0.0
    %962 = vmatprep.subr.mxu0 0.0
    %963 = vmatpush1.msra.mxu0 0.0
    %964 = vmatprep.subr.mxu0 0.0
    %965 = vmatpush1.msra.mxu0 0.0
    %966 = vmatprep.subr.mxu0 0.0
    %967 = vmatpush1.msra.mxu0 0.0
    %968 = vmatprep.subr.mxu0 0.0
    %969 = vmatpush1.msra.mxu0 0.0
    %970 = vmatprep.subr.mxu0 0.0
    %971 = vmatpush1.msra.mxu0 0.0
    %972 = vmatprep.subr.mxu0 0.0
    %973 = vmatpush1.msra.mxu0 0.0
    %974 = vmatprep.subr.mxu0 0.0
    %975 = vmatpush1.msra.mxu0 0.0
    %976 = vmatprep.subr.mxu0 0.0
    %977 = vmatpush1.msra.mxu0 0.0
    %978 = vmatprep.subr.mxu0 0.0
    %979 = vmatpush1.msra.mxu0 0.0
    %980 = vmatprep.subr.mxu0 0.0
    %981 = vmatpush1.msra.mxu0 0.0
    %982 = vmatprep.subr.mxu0 0.0
    %983 = vmatpush1.msra.mxu0 0.0
    %984 = vmatprep.subr.mxu0 0.0
    %985 = vmatpush1.msra.mxu0 0.0
    %986 = vmatprep.subr.mxu0 0.0
    %987 = vmatpush1.msra.mxu0 0.0
    %988 = vmatprep.subr.mxu0 0.0
    %989 = vmatpush1.msra.mxu0 0.0
    %990 = vmatprep.subr.mxu0 0.0
    %991 = vmatpush1.msra.mxu0 0.0
    %992 = vmatprep.subr.mxu0 0.0
    %993 = vmatpush1.msra.mxu0 0.0
    %994 = vmatprep.subr.mxu0 0.0
    %995 = vmatpush1.msra.mxu0 0.0
    %996 = vmatprep.subr.mxu0 0.0
    %997 = vmatpush1.msra.mxu0 0.0
    %998 = vmatprep.subr.mxu0 0.0
    %999 = vmatpush1.msra.mxu0 0.0
    %1000 = vmatprep.subr.mxu0 0.0
    %1001 = vmatpush1.msra.mxu0 0.0
    %1002 = vmatprep.subr.mxu0 0.0
    %1003 = vmatpush1.msra.mxu0 0.0
    %1004 = vmatprep.subr.mxu0 0.0
    %1005 = vmatpush1.msra.mxu0 0.0
    %1006 = vmatprep.subr.mxu0 0.0
    %1007 = vmatpush1.msra.mxu0 0.0
    %1008 = vmatprep.subr.mxu0 0.0
    %1009 = vmatpush1.msra.mxu0 0.0
    %1010 = vmatprep.subr.mxu0 0.0
    %1011 = vmatpush1.msra.mxu0 0.0
    %1012 = vmatprep.subr.mxu0 0.0
    %1013 = vmatpush1.msra.mxu0 0.0
    %1014 = vmatprep.mubr.f32.mxu0 0.0
    %1015 = vmatmul.mubr.f32.gmra.mrb[0].mxu0 %v948
    %v1016 = vpop.f32.mrb[0].mxu0
    %v1017 = vadd.f32 %v215, %v1016
    %v1018 = vpop.f32.mrb[0].mxu0
    %1019 = vdwg.mxu0
    %v1020 = vsel %vm193, %v941, 0
    %1022 = vmatprep.subr.mxu0 0.0
    %1023 = vmatpush1.msra.mxu0 %v206
    %1024 = vmatprep.subr.mxu0 0.0
    %1025 = vmatpush1.msra.mxu0 %v207
    %1026 = vmatprep.subr.mxu0 0.0
    %1027 = vmatpush1.msra.mxu0 %v208
    %1028 = vmatprep.subr.mxu0 0.0
    %1029 = vmatpush1.msra.mxu0 %v209
    %1030 = vmatprep.subr.mxu0 0.0
    %1031 = vmatpush1.msra.mxu0 0.0
    %1032 = vmatprep.subr.mxu0 0.0
    %1033 = vmatpush1.msra.mxu0 0.0
    %1034 = vmatprep.subr.mxu0 0.0
    %1035 = vmatpush1.msra.mxu0 0.0
    %1036 = vmatprep.subr.mxu0 0.0
    %1037 = vmatpush1.msra.mxu0 0.0
    %1038 = vmatprep.subr.mxu0 0.0
    %1039 = vmatpush1.msra.mxu0 0.0
    %1040 = vmatprep.subr.mxu0 0.0
    %1041 = vmatpush1.msra.mxu0 0.0
    %1042 = vmatprep.subr.mxu0 0.0
    %1043 = vmatpush1.msra.mxu0 0.0
    %1044 = vmatprep.subr.mxu0 0.0
    %1045 = vmatpush1.msra.mxu0 0.0
    %1046 = vmatprep.subr.mxu0 0.0
    %1047 = vmatpush1.msra.mxu0 0.0
    %1048 = vmatprep.subr.mxu0 0.0
    %1049 = vmatpush1.msra.mxu0 0.0
    %1050 = vmatprep.subr.mxu0 0.0
    %1051 = vmatpush1.msra.mxu0 0.0
    %1052 = vmatprep.subr.mxu0 0.0
    %1053 = vmatpush1.msra.mxu0 0.0
    %1054 = vmatprep.subr.mxu0 0.0
    %1055 = vmatpush1.msra.mxu0 0.0
    %1056 = vmatprep.subr.mxu0 0.0
    %1057 = vmatpush1.msra.mxu0 0.0
    %1058 = vmatprep.subr.mxu0 0.0
    %1059 = vmatpush1.msra.mxu0 0.0
    %1060 = vmatprep.subr.mxu0 0.0
    %1061 = vmatpush1.msra.mxu0 0.0
    %1062 = vmatprep.subr.mxu0 0.0
    %1063 = vmatpush1.msra.mxu0 0.0
    %1064 = vmatprep.subr.mxu0 0.0
    %1065 = vmatpush1.msra.mxu0 0.0
    %1066 = vmatprep.subr.mxu0 0.0
    %1067 = vmatpush1.msra.mxu0 0.0
    %1068 = vmatprep.subr.mxu0 0.0
    %1069 = vmatpush1.msra.mxu0 0.0
    %1070 = vmatprep.subr.mxu0 0.0
    %1071 = vmatpush1.msra.mxu0 0.0
    %1072 = vmatprep.subr.mxu0 0.0
    %1073 = vmatpush1.msra.mxu0 0.0
    %1074 = vmatprep.subr.mxu0 0.0
    %1075 = vmatpush1.msra.mxu0 0.0
    %1076 = vmatprep.subr.mxu0 0.0
    %1077 = vmatpush1.msra.mxu0 0.0
    %1078 = vmatprep.subr.mxu0 0.0
    %1079 = vmatpush1.msra.mxu0 0.0
    %1080 = vmatprep.subr.mxu0 0.0
    %1081 = vmatpush1.msra.mxu0 0.0
    %1082 = vmatprep.subr.mxu0 0.0
    %1083 = vmatpush1.msra.mxu0 0.0
    %1084 = vmatprep.subr.mxu0 0.0
    %1085 = vmatpush1.msra.mxu0 0.0
    %1086 = vmatprep.mubr.f32.mxu0 0.0
    %1087 = vmatmul.mubr.f32.gmra.mrb[0].mxu0 %v1020
    %v1088 = vpop.f32.mrb[0].mxu0
    %v1089 = vadd.f32 0.0, %v1088
    %v1090 = vpop.f32.mrb[0].mxu0
    %1091 = vdwg.mxu0
    %v1092 = vadd.f32 %v1017, %v1089
    %v1093 = vxor.u32 %v1092, 2147483648
    %v1094 = vmul.f32 %v1093, 1.442695
    %v1095 = vpow.pop %v1094
    %v1096 = vadd.f32 %v1095, 1.0
    %v1097 = vrcp.pop %v1096
    %v1098 = vmul.f32 1.0, %v1097
    %v1099 = vadd.f32 %v1089, %v378
    %1101 = vrot.lane.b32.xlu0 %v1099, 64
    %v1102 = vpop.permute.xlu0 %1101
    %v1104 = vmul.f32 %v1098, %v1102
    %1106 = vrot.lane.b32.xlu0 %v1104, 64
    %v1107 = vpop.permute.xlu0 %1106
    %v1109 = vadd.f32 %v1017, %v1107
    %v1110 = vtanh.pop %v1109
    %v1111 = vsub.f32 1.0, %v1098
    %1113 = vrot.lane.b32.xlu0 %v1110, 96
    %v1114 = vpop.permute.xlu0 %1113
    %v1116 = vmul.f32 %v1111, %v1114
    %v1117 = vmul.f32 %v1098, %v938
    %v1118 = vadd.f32 %v1116, %v1117
    %1120 = vrot.lane.b32.xlu0 %v1118, 96
    %v1121 = vpop.permute.xlu0 %1120
    %s1123 = scalar_lea.vmem [#allocation3], 32
    %1124 = vst.msk [vmem:[%s1123] sm:$0xff] %vm193, %v1121
    %s1125 = scalar_lea.vmem [#allocation2], 40
    %v1126 = vld [vmem:[%s1125] sm:$0xff]
    %v1128 = vsel %vm193, %v1126, 0
    %1130 = vmatprep.subr.mxu0 0.0
    %1131 = vmatpush1.msra.mxu0 %v202
    %1132 = vmatprep.subr.mxu0 0.0
    %1133 = vmatpush1.msra.mxu0 %v203
    %1134 = vmatprep.subr.mxu0 0.0
    %1135 = vmatpush1.msra.mxu0 %v204
    %1136 = vmatprep.subr.mxu0 0.0
    %1137 = vmatpush1.msra.mxu0 %v205
    %1138 = vmatprep.subr.mxu0 0.0
    %1139 = vmatpush1.msra.mxu0 0.0
    %1140 = vmatprep.subr.mxu0 0.0
    %1141 = vmatpush1.msra.mxu0 0.0
    %1142 = vmatprep.subr.mxu0 0.0
    %1143 = vmatpush1.msra.mxu0 0.0
    %1144 = vmatprep.subr.mxu0 0.0
    %1145 = vmatpush1.msra.mxu0 0.0
    %1146 = vmatprep.subr.mxu0 0.0
    %1147 = vmatpush1.msra.mxu0 0.0
    %1148 = vmatprep.subr.mxu0 0.0
    %1149 = vmatpush1.msra.mxu0 0.0
    %1150 = vmatprep.subr.mxu0 0.0
    %1151 = vmatpush1.msra.mxu0 0.0
    %1152 = vmatprep.subr.mxu0 0.0
    %1153 = vmatpush1.msra.mxu0 0.0
    %1154 = vmatprep.subr.mxu0 0.0
    %1155 = vmatpush1.msra.mxu0 0.0
    %1156 = vmatprep.subr.mxu0 0.0
    %1157 = vmatpush1.msra.mxu0 0.0
    %1158 = vmatprep.subr.mxu0 0.0
    %1159 = vmatpush1.msra.mxu0 0.0
    %1160 = vmatprep.subr.mxu0 0.0
    %1161 = vmatpush1.msra.mxu0 0.0
    %1162 = vmatprep.subr.mxu0 0.0
    %1163 = vmatpush1.msra.mxu0 0.0
    %1164 = vmatprep.subr.mxu0 0.0
    %1165 = vmatpush1.msra.mxu0 0.0
    %1166 = vmatprep.subr.mxu0 0.0
    %1167 = vmatpush1.msra.mxu0 0.0
    %1168 = vmatprep.subr.mxu0 0.0
    %1169 = vmatpush1.msra.mxu0 0.0
    %1170 = vmatprep.subr.mxu0 0.0
    %1171 = vmatpush1.msra.mxu0 0.0
    %1172 = vmatprep.subr.mxu0 0.0
    %1173 = vmatpush1.msra.mxu0 0.0
    %1174 = vmatprep.subr.mxu0 0.0
    %1175 = vmatpush1.msra.mxu0 0.0
    %1176 = vmatprep.subr.mxu0 0.0
    %1177 = vmatpush1.msra.mxu0 0.0
    %1178 = vmatprep.subr.mxu0 0.0
    %1179 = vmatpush1.msra.mxu0 0.0
    %1180 = vmatprep.subr.mxu0 0.0
    %1181 = vmatpush1.msra.mxu0 0.0
    %1182 = vmatprep.subr.mxu0 0.0
    %1183 = vmatpush1.msra.mxu0 0.0
    %1184 = vmatprep.subr.mxu0 0.0
    %1185 = vmatpush1.msra.mxu0 0.0
    %1186 = vmatprep.subr.mxu0 0.0
    %1187 = vmatpush1.msra.mxu0 0.0
    %1188 = vmatprep.subr.mxu0 0.0
    %1189 = vmatpush1.msra.mxu0 0.0
    %1190 = vmatprep.subr.mxu0 0.0
    %1191 = vmatpush1.msra.mxu0 0.0
    %1192 = vmatprep.subr.mxu0 0.0
    %1193 = vmatpush1.msra.mxu0 0.0
    %1194 = vmatprep.mubr.f32.mxu0 0.0
    %1195 = vmatmul.mubr.f32.gmra.mrb[0].mxu0 %v1128
    %v1196 = vpop.f32.mrb[0].mxu0
    %v1197 = vadd.f32 %v215, %v1196
    %v1198 = vpop.f32.mrb[0].mxu0
    %1199 = vdwg.mxu0
    %v1200 = vsel %vm193, %v1121, 0
    %1202 = vmatprep.subr.mxu0 0.0
    %1203 = vmatpush1.msra.mxu0 %v206
    %1204 = vmatprep.subr.mxu0 0.0
    %1205 = vmatpush1.msra.mxu0 %v207
    %1206 = vmatprep.subr.mxu0 0.0
    %1207 = vmatpush1.msra.mxu0 %v208
    %1208 = vmatprep.subr.mxu0 0.0
    %1209 = vmatpush1.msra.mxu0 %v209
    %1210 = vmatprep.subr.mxu0 0.0
    %1211 = vmatpush1.msra.mxu0 0.0
    %1212 = vmatprep.subr.mxu0 0.0
    %1213 = vmatpush1.msra.mxu0 0.0
    %1214 = vmatprep.subr.mxu0 0.0
    %1215 = vmatpush1.msra.mxu0 0.0
    %1216 = vmatprep.subr.mxu0 0.0
    %1217 = vmatpush1.msra.mxu0 0.0
    %1218 = vmatprep.subr.mxu0 0.0
    %1219 = vmatpush1.msra.mxu0 0.0
    %1220 = vmatprep.subr.mxu0 0.0
    %1221 = vmatpush1.msra.mxu0 0.0
    %1222 = vmatprep.subr.mxu0 0.0
    %1223 = vmatpush1.msra.mxu0 0.0
    %1224 = vmatprep.subr.mxu0 0.0
    %1225 = vmatpush1.msra.mxu0 0.0
    %1226 = vmatprep.subr.mxu0 0.0
    %1227 = vmatpush1.msra.mxu0 0.0
    %1228 = vmatprep.subr.mxu0 0.0
    %1229 = vmatpush1.msra.mxu0 0.0
    %1230 = vmatprep.subr.mxu0 0.0
    %1231 = vmatpush1.msra.mxu0 0.0
    %1232 = vmatprep.subr.mxu0 0.0
    %1233 = vmatpush1.msra.mxu0 0.0
    %1234 = vmatprep.subr.mxu0 0.0
    %1235 = vmatpush1.msra.mxu0 0.0
    %1236 = vmatprep.subr.mxu0 0.0
    %1237 = vmatpush1.msra.mxu0 0.0
    %1238 = vmatprep.subr.mxu0 0.0
    %1239 = vmatpush1.msra.mxu0 0.0
    %1240 = vmatprep.subr.mxu0 0.0
    %1241 = vmatpush1.msra.mxu0 0.0
    %1242 = vmatprep.subr.mxu0 0.0
    %1243 = vmatpush1.msra.mxu0 0.0
    %1244 = vmatprep.subr.mxu0 0.0
    %1245 = vmatpush1.msra.mxu0 0.0
    %1246 = vmatprep.subr.mxu0 0.0
    %1247 = vmatpush1.msra.mxu0 0.0
    %1248 = vmatprep.subr.mxu0 0.0
    %1249 = vmatpush1.msra.mxu0 0.0
    %1250 = vmatprep.subr.mxu0 0.0
    %1251 = vmatpush1.msra.mxu0 0.0
    %1252 = vmatprep.subr.mxu0 0.0
    %1253 = vmatpush1.msra.mxu0 0.0
    %1254 = vmatprep.subr.mxu0 0.0
    %1255 = vmatpush1.msra.mxu0 0.0
    %1256 = vmatprep.subr.mxu0 0.0
    %1257 = vmatpush1.msra.mxu0 0.0
    %1258 = vmatprep.subr.mxu0 0.0
    %1259 = vmatpush1.msra.mxu0 0.0
    %1260 = vmatprep.subr.mxu0 0.0
    %1261 = vmatpush1.msra.mxu0 0.0
    %1262 = vmatprep.subr.mxu0 0.0
    %1263 = vmatpush1.msra.mxu0 0.0
    %1264 = vmatprep.subr.mxu0 0.0
    %1265 = vmatpush1.msra.mxu0 0.0
    %1266 = vmatprep.mubr.f32.mxu0 0.0
    %1267 = vmatmul.mubr.f32.gmra.mrb[0].mxu0 %v1200
    %v1268 = vpop.f32.mrb[0].mxu0
    %v1269 = vadd.f32 0.0, %v1268
    %v1270 = vpop.f32.mrb[0].mxu0
    %1271 = vdwg.mxu0
    %v1272 = vadd.f32 %v1197, %v1269
    %v1273 = vxor.u32 %v1272, 2147483648
    %v1274 = vmul.f32 %v1273, 1.442695
    %v1275 = vpow.pop %v1274
    %v1276 = vadd.f32 %v1275, 1.0
    %v1277 = vrcp.pop %v1276
    %v1278 = vmul.f32 1.0, %v1277
    %v1279 = vadd.f32 %v1269, %v378
    %1281 = vrot.lane.b32.xlu0 %v1279, 64
    %v1282 = vpop.permute.xlu0 %1281
    %v1284 = vmul.f32 %v1278, %v1282
    %1286 = vrot.lane.b32.xlu0 %v1284, 64
    %v1287 = vpop.permute.xlu0 %1286
    %v1289 = vadd.f32 %v1197, %v1287
    %v1290 = vtanh.pop %v1289
    %v1291 = vsub.f32 1.0, %v1278
    %1293 = vrot.lane.b32.xlu0 %v1290, 96
    %v1294 = vpop.permute.xlu0 %1293
    %v1296 = vmul.f32 %v1291, %v1294
    %v1297 = vmul.f32 %v1278, %v1118
    %v1298 = vadd.f32 %v1296, %v1297
    %1300 = vrot.lane.b32.xlu0 %v1298, 96
    %v1301 = vpop.permute.xlu0 %1300
    %s1303 = scalar_lea.vmem [#allocation3], 40
    %1304 = vst.msk [vmem:[%s1303] sm:$0xff] %vm193, %v1301
    %s1305 = scalar_lea.vmem [#allocation2], 48
    %v1306 = vld [vmem:[%s1305] sm:$0xff]
    %v1308 = vsel %vm193, %v1306, 0
    %1310 = vmatprep.subr.mxu0 0.0
    %1311 = vmatpush1.msra.mxu0 %v202
    %1312 = vmatprep.subr.mxu0 0.0
    %1313 = vmatpush1.msra.mxu0 %v203
    %1314 = vmatprep.subr.mxu0 0.0
    %1315 = vmatpush1.msra.mxu0 %v204
    %1316 = vmatprep.subr.mxu0 0.0
    %1317 = vmatpush1.msra.mxu0 %v205
    %1318 = vmatprep.subr.mxu0 0.0
    %1319 = vmatpush1.msra.mxu0 0.0
    %1320 = vmatprep.subr.mxu0 0.0
    %1321 = vmatpush1.msra.mxu0 0.0
    %1322 = vmatprep.subr.mxu0 0.0
    %1323 = vmatpush1.msra.mxu0 0.0
    %1324 = vmatprep.subr.mxu0 0.0
    %1325 = vmatpush1.msra.mxu0 0.0
    %1326 = vmatprep.subr.mxu0 0.0
    %1327 = vmatpush1.msra.mxu0 0.0
    %1328 = vmatprep.subr.mxu0 0.0
    %1329 = vmatpush1.msra.mxu0 0.0
    %1330 = vmatprep.subr.mxu0 0.0
    %1331 = vmatpush1.msra.mxu0 0.0
    %1332 = vmatprep.subr.mxu0 0.0
    %1333 = vmatpush1.msra.mxu0 0.0
    %1334 = vmatprep.subr.mxu0 0.0
    %1335 = vmatpush1.msra.mxu0 0.0
    %1336 = vmatprep.subr.mxu0 0.0
    %1337 = vmatpush1.msra.mxu0 0.0
    %1338 = vmatprep.subr.mxu0 0.0
    %1339 = vmatpush1.msra.mxu0 0.0
    %1340 = vmatprep.subr.mxu0 0.0
    %1341 = vmatpush1.msra.mxu0 0.0
    %1342 = vmatprep.subr.mxu0 0.0
    %1343 = vmatpush1.msra.mxu0 0.0
    %1344 = vmatprep.subr.mxu0 0.0
    %1345 = vmatpush1.msra.mxu0 0.0
    %1346 = vmatprep.subr.mxu0 0.0
    %1347 = vmatpush1.msra.mxu0 0.0
    %1348 = vmatprep.subr.mxu0 0.0
    %1349 = vmatpush1.msra.mxu0 0.0
    %1350 = vmatprep.subr.mxu0 0.0
    %1351 = vmatpush1.msra.mxu0 0.0
    %1352 = vmatprep.subr.mxu0 0.0
    %1353 = vmatpush1.msra.mxu0 0.0
    %1354 = vmatprep.subr.mxu0 0.0
    %1355 = vmatpush1.msra.mxu0 0.0
    %1356 = vmatprep.subr.mxu0 0.0
    %1357 = vmatpush1.msra.mxu0 0.0
    %1358 = vmatprep.subr.mxu0 0.0
    %1359 = vmatpush1.msra.mxu0 0.0
    %1360 = vmatprep.subr.mxu0 0.0
    %1361 = vmatpush1.msra.mxu0 0.0
    %1362 = vmatprep.subr.mxu0 0.0
    %1363 = vmatpush1.msra.mxu0 0.0
    %1364 = vmatprep.subr.mxu0 0.0
    %1365 = vmatpush1.msra.mxu0 0.0
    %1366 = vmatprep.subr.mxu0 0.0
    %1367 = vmatpush1.msra.mxu0 0.0
    %1368 = vmatprep.subr.mxu0 0.0
    %1369 = vmatpush1.msra.mxu0 0.0
    %1370 = vmatprep.subr.mxu0 0.0
    %1371 = vmatpush1.msra.mxu0 0.0
    %1372 = vmatprep.subr.mxu0 0.0
    %1373 = vmatpush1.msra.mxu0 0.0
    %1374 = vmatprep.mubr.f32.mxu0 0.0
    %1375 = vmatmul.mubr.f32.gmra.mrb[0].mxu0 %v1308
    %v1376 = vpop.f32.mrb[0].mxu0
    %v1377 = vadd.f32 %v215, %v1376
    %v1378 = vpop.f32.mrb[0].mxu0
    %1379 = vdwg.mxu0
    %v1380 = vsel %vm193, %v1301, 0
    %1382 = vmatprep.subr.mxu0 0.0
    %1383 = vmatpush1.msra.mxu0 %v206
    %1384 = vmatprep.subr.mxu0 0.0
    %1385 = vmatpush1.msra.mxu0 %v207
    %1386 = vmatprep.subr.mxu0 0.0
    %1387 = vmatpush1.msra.mxu0 %v208
    %1388 = vmatprep.subr.mxu0 0.0
    %1389 = vmatpush1.msra.mxu0 %v209
    %1390 = vmatprep.subr.mxu0 0.0
    %1391 = vmatpush1.msra.mxu0 0.0
    %1392 = vmatprep.subr.mxu0 0.0
    %1393 = vmatpush1.msra.mxu0 0.0
    %1394 = vmatprep.subr.mxu0 0.0
    %1395 = vmatpush1.msra.mxu0 0.0
    %1396 = vmatprep.subr.mxu0 0.0
    %1397 = vmatpush1.msra.mxu0 0.0
    %1398 = vmatprep.subr.mxu0 0.0
    %1399 = vmatpush1.msra.mxu0 0.0
    %1400 = vmatprep.subr.mxu0 0.0
    %1401 = vmatpush1.msra.mxu0 0.0
    %1402 = vmatprep.subr.mxu0 0.0
    %1403 = vmatpush1.msra.mxu0 0.0
    %1404 = vmatprep.subr.mxu0 0.0
    %1405 = vmatpush1.msra.mxu0 0.0
    %1406 = vmatprep.subr.mxu0 0.0
    %1407 = vmatpush1.msra.mxu0 0.0
    %1408 = vmatprep.subr.mxu0 0.0
    %1409 = vmatpush1.msra.mxu0 0.0
    %1410 = vmatprep.subr.mxu0 0.0
    %1411 = vmatpush1.msra.mxu0 0.0
    %1412 = vmatprep.subr.mxu0 0.0
    %1413 = vmatpush1.msra.mxu0 0.0
    %1414 = vmatprep.subr.mxu0 0.0
    %1415 = vmatpush1.msra.mxu0 0.0
    %1416 = vmatprep.subr.mxu0 0.0
    %1417 = vmatpush1.msra.mxu0 0.0
    %1418 = vmatprep.subr.mxu0 0.0
    %1419 = vmatpush1.msra.mxu0 0.0
    %1420 = vmatprep.subr.mxu0 0.0
    %1421 = vmatpush1.msra.mxu0 0.0
    %1422 = vmatprep.subr.mxu0 0.0
    %1423 = vmatpush1.msra.mxu0 0.0
    %1424 = vmatprep.subr.mxu0 0.0
    %1425 = vmatpush1.msra.mxu0 0.0
    %1426 = vmatprep.subr.mxu0 0.0
    %1427 = vmatpush1.msra.mxu0 0.0
    %1428 = vmatprep.subr.mxu0 0.0
    %1429 = vmatpush1.msra.mxu0 0.0
    %1430 = vmatprep.subr.mxu0 0.0
    %1431 = vmatpush1.msra.mxu0 0.0
    %1432 = vmatprep.subr.mxu0 0.0
    %1433 = vmatpush1.msra.mxu0 0.0
    %1434 = vmatprep.subr.mxu0 0.0
    %1435 = vmatpush1.msra.mxu0 0.0
    %1436 = vmatprep.subr.mxu0 0.0
    %1437 = vmatpush1.msra.mxu0 0.0
    %1438 = vmatprep.subr.mxu0 0.0
    %1439 = vmatpush1.msra.mxu0 0.0
    %1440 = vmatprep.subr.mxu0 0.0
    %1441 = vmatpush1.msra.mxu0 0.0
    %1442 = vmatprep.subr.mxu0 0.0
    %1443 = vmatpush1.msra.mxu0 0.0
    %1444 = vmatprep.subr.mxu0 0.0
    %1445 = vmatpush1.msra.mxu0 0.0
    %1446 = vmatprep.mubr.f32.mxu0 0.0
    %1447 = vmatmul.mubr.f32.gmra.mrb[0].mxu0 %v1380
    %v1448 = vpop.f32.mrb[0].mxu0
    %v1449 = vadd.f32 0.0, %v1448
    %v1450 = vpop.f32.mrb[0].mxu0
    %1451 = vdwg.mxu0
    %v1452 = vadd.f32 %v1377, %v1449
    %v1453 = vxor.u32 %v1452, 2147483648
    %v1454 = vmul.f32 %v1453, 1.442695
    %v1455 = vpow.pop %v1454
    %v1456 = vadd.f32 %v1455, 1.0
    %v1457 = vrcp.pop %v1456
    %v1458 = vmul.f32 1.0, %v1457
    %v1459 = vadd.f32 %v1449, %v378
    %1461 = vrot.lane.b32.xlu0 %v1459, 64
    %v1462 = vpop.permute.xlu0 %1461
    %v1464 = vmul.f32 %v1458, %v1462
    %1466 = vrot.lane.b32.xlu0 %v1464, 64
    %v1467 = vpop.permute.xlu0 %1466
    %v1469 = vadd.f32 %v1377, %v1467
    %v1470 = vtanh.pop %v1469
    %v1471 = vsub.f32 1.0, %v1458
    %1473 = vrot.lane.b32.xlu0 %v1470, 96
    %v1474 = vpop.permute.xlu0 %1473
    %v1476 = vmul.f32 %v1471, %v1474
    %v1477 = vmul.f32 %v1458, %v1298
    %v1478 = vadd.f32 %v1476, %v1477
    %1480 = vrot.lane.b32.xlu0 %v1478, 96
    %v1481 = vpop.permute.xlu0 %1480
    %s1483 = scalar_lea.vmem [#allocation3], 48
    %1484 = vst.msk [vmem:[%s1483] sm:$0xff] %vm193, %v1481
    %s1485 = scalar_lea.vmem [#allocation2], 56
    %v1486 = vld [vmem:[%s1485] sm:$0xff]
    %v1488 = vsel %vm193, %v1486, 0
    %1490 = vmatprep.subr.mxu0 0.0
    %1491 = vmatpush1.msra.mxu0 %v202
    %1492 = vmatprep.subr.mxu0 0.0
    %1493 = vmatpush1.msra.mxu0 %v203
    %1494 = vmatprep.subr.mxu0 0.0
    %1495 = vmatpush1.msra.mxu0 %v204
    %1496 = vmatprep.subr.mxu0 0.0
    %1497 = vmatpush1.msra.mxu0 %v205
    %1498 = vmatprep.subr.mxu0 0.0
    %1499 = vmatpush1.msra.mxu0 0.0
    %1500 = vmatprep.subr.mxu0 0.0
    %1501 = vmatpush1.msra.mxu0 0.0
    %1502 = vmatprep.subr.mxu0 0.0
    %1503 = vmatpush1.msra.mxu0 0.0
    %1504 = vmatprep.subr.mxu0 0.0
    %1505 = vmatpush1.msra.mxu0 0.0
    %1506 = vmatprep.subr.mxu0 0.0
    %1507 = vmatpush1.msra.mxu0 0.0
    %1508 = vmatprep.subr.mxu0 0.0
    %1509 = vmatpush1.msra.mxu0 0.0
    %1510 = vmatprep.subr.mxu0 0.0
    %1511 = vmatpush1.msra.mxu0 0.0
    %1512 = vmatprep.subr.mxu0 0.0
    %1513 = vmatpush1.msra.mxu0 0.0
    %1514 = vmatprep.subr.mxu0 0.0
    %1515 = vmatpush1.msra.mxu0 0.0
    %1516 = vmatprep.subr.mxu0 0.0
    %1517 = vmatpush1.msra.mxu0 0.0
    %1518 = vmatprep.subr.mxu0 0.0
    %1519 = vmatpush1.msra.mxu0 0.0
    %1520 = vmatprep.subr.mxu0 0.0
    %1521 = vmatpush1.msra.mxu0 0.0
    %1522 = vmatprep.subr.mxu0 0.0
    %1523 = vmatpush1.msra.mxu0 0.0
    %1524 = vmatprep.subr.mxu0 0.0
    %1525 = vmatpush1.msra.mxu0 0.0
    %1526 = vmatprep.subr.mxu0 0.0
    %1527 = vmatpush1.msra.mxu0 0.0
    %1528 = vmatprep.subr.mxu0 0.0
    %1529 = vmatpush1.msra.mxu0 0.0
    %1530 = vmatprep.subr.mxu0 0.0
    %1531 = vmatpush1.msra.mxu0 0.0
    %1532 = vmatprep.subr.mxu0 0.0
    %1533 = vmatpush1.msra.mxu0 0.0
    %1534 = vmatprep.subr.mxu0 0.0
    %1535 = vmatpush1.msra.mxu0 0.0
    %1536 = vmatprep.subr.mxu0 0.0
    %1537 = vmatpush1.msra.mxu0 0.0
    %1538 = vmatprep.subr.mxu0 0.0
    %1539 = vmatpush1.msra.mxu0 0.0
    %1540 = vmatprep.subr.mxu0 0.0
    %1541 = vmatpush1.msra.mxu0 0.0
    %1542 = vmatprep.subr.mxu0 0.0
    %1543 = vmatpush1.msra.mxu0 0.0
    %1544 = vmatprep.subr.mxu0 0.0
    %1545 = vmatpush1.msra.mxu0 0.0
    %1546 = vmatprep.subr.mxu0 0.0
    %1547 = vmatpush1.msra.mxu0 0.0
    %1548 = vmatprep.subr.mxu0 0.0
    %1549 = vmatpush1.msra.mxu0 0.0
    %1550 = vmatprep.subr.mxu0 0.0
    %1551 = vmatpush1.msra.mxu0 0.0
    %1552 = vmatprep.subr.mxu0 0.0
    %1553 = vmatpush1.msra.mxu0 0.0
    %1554 = vmatprep.mubr.f32.mxu0 0.0
    %1555 = vmatmul.mubr.f32.gmra.mrb[0].mxu0 %v1488
    %v1556 = vpop.f32.mrb[0].mxu0
    %v1557 = vadd.f32 %v215, %v1556
    %v1558 = vpop.f32.mrb[0].mxu0
    %1559 = vdwg.mxu0
    %v1560 = vsel %vm193, %v1481, 0
    %1562 = vmatprep.subr.mxu0 0.0
    %1563 = vmatpush1.msra.mxu0 %v206
    %1564 = vmatprep.subr.mxu0 0.0
    %1565 = vmatpush1.msra.mxu0 %v207
    %1566 = vmatprep.subr.mxu0 0.0
    %1567 = vmatpush1.msra.mxu0 %v208
    %1568 = vmatprep.subr.mxu0 0.0
    %1569 = vmatpush1.msra.mxu0 %v209
    %1570 = vmatprep.subr.mxu0 0.0
    %1571 = vmatpush1.msra.mxu0 0.0
    %1572 = vmatprep.subr.mxu0 0.0
    %1573 = vmatpush1.msra.mxu0 0.0
    %1574 = vmatprep.subr.mxu0 0.0
    %1575 = vmatpush1.msra.mxu0 0.0
    %1576 = vmatprep.subr.mxu0 0.0
    %1577 = vmatpush1.msra.mxu0 0.0
    %1578 = vmatprep.subr.mxu0 0.0
    %1579 = vmatpush1.msra.mxu0 0.0
    %1580 = vmatprep.subr.mxu0 0.0
    %1581 = vmatpush1.msra.mxu0 0.0
    %1582 = vmatprep.subr.mxu0 0.0
    %1583 = vmatpush1.msra.mxu0 0.0
    %1584 = vmatprep.subr.mxu0 0.0
    %1585 = vmatpush1.msra.mxu0 0.0
    %1586 = vmatprep.subr.mxu0 0.0
    %1587 = vmatpush1.msra.mxu0 0.0
    %1588 = vmatprep.subr.mxu0 0.0
    %1589 = vmatpush1.msra.mxu0 0.0
    %1590 = vmatprep.subr.mxu0 0.0
    %1591 = vmatpush1.msra.mxu0 0.0
    %1592 = vmatprep.subr.mxu0 0.0
    %1593 = vmatpush1.msra.mxu0 0.0
    %1594 = vmatprep.subr.mxu0 0.0
    %1595 = vmatpush1.msra.mxu0 0.0
    %1596 = vmatprep.subr.mxu0 0.0
    %1597 = vmatpush1.msra.mxu0 0.0
    %1598 = vmatprep.subr.mxu0 0.0
    %1599 = vmatpush1.msra.mxu0 0.0
    %1600 = vmatprep.subr.mxu0 0.0
    %1601 = vmatpush1.msra.mxu0 0.0
    %1602 = vmatprep.subr.mxu0 0.0
    %1603 = vmatpush1.msra.mxu0 0.0
    %1604 = vmatprep.subr.mxu0 0.0
    %1605 = vmatpush1.msra.mxu0 0.0
    %1606 = vmatprep.subr.mxu0 0.0
    %1607 = vmatpush1.msra.mxu0 0.0
    %1608 = vmatprep.subr.mxu0 0.0
    %1609 = vmatpush1.msra.mxu0 0.0
    %1610 = vmatprep.subr.mxu0 0.0
    %1611 = vmatpush1.msra.mxu0 0.0
    %1612 = vmatprep.subr.mxu0 0.0
    %1613 = vmatpush1.msra.mxu0 0.0
    %1614 = vmatprep.subr.mxu0 0.0
    %1615 = vmatpush1.msra.mxu0 0.0
    %1616 = vmatprep.subr.mxu0 0.0
    %1617 = vmatpush1.msra.mxu0 0.0
    %1618 = vmatprep.subr.mxu0 0.0
    %1619 = vmatpush1.msra.mxu0 0.0
    %1620 = vmatprep.subr.mxu0 0.0
    %1621 = vmatpush1.msra.mxu0 0.0
    %1622 = vmatprep.subr.mxu0 0.0
    %1623 = vmatpush1.msra.mxu0 0.0
    %1624 = vmatprep.subr.mxu0 0.0
    %1625 = vmatpush1.msra.mxu0 0.0
    %1626 = vmatprep.mubr.f32.mxu0 0.0
    %1627 = vmatmul.mubr.f32.gmra.mrb[0].mxu0 %v1560
    %v1628 = vpop.f32.mrb[0].mxu0
    %v1629 = vadd.f32 0.0, %v1628
    %v1630 = vpop.f32.mrb[0].mxu0
    %1631 = vdwg.mxu0
    %v1632 = vadd.f32 %v1557, %v1629
    %v1633 = vxor.u32 %v1632, 2147483648
    %v1634 = vmul.f32 %v1633, 1.442695
    %v1635 = vpow.pop %v1634
    %v1636 = vadd.f32 %v1635, 1.0
    %v1637 = vrcp.pop %v1636
    %v1638 = vmul.f32 1.0, %v1637
    %v1639 = vadd.f32 %v1629, %v378
    %1641 = vrot.lane.b32.xlu0 %v1639, 64
    %v1642 = vpop.permute.xlu0 %1641
    %v1644 = vmul.f32 %v1638, %v1642
    %1646 = vrot.lane.b32.xlu0 %v1644, 64
    %v1647 = vpop.permute.xlu0 %1646
    %v1649 = vadd.f32 %v1557, %v1647
    %v1650 = vtanh.pop %v1649
    %v1651 = vsub.f32 1.0, %v1638
    %1653 = vrot.lane.b32.xlu0 %v1650, 96
    %v1654 = vpop.permute.xlu0 %1653
    %v1656 = vmul.f32 %v1651, %v1654
    %v1657 = vmul.f32 %v1638, %v1478
    %v1658 = vadd.f32 %v1656, %v1657
    %1660 = vrot.lane.b32.xlu0 %v1658, 96
    %v1661 = vpop.permute.xlu0 %1660
    %s1663 = scalar_lea.vmem [#allocation3], 56
    %1664 = vst.msk [vmem:[%s1663] sm:$0xff] %vm193, %v1661
    %v1665 = vld [vmem:[%s1485] sm:$0xff]
    %v1666 = vld [vmem:[%s7] sm:$0xff]
    %v1667 = vld [vmem:[%s7 + $0x8] sm:$0xff]
    %v1668 = vld [vmem:[%s7 + $0x10] sm:$0xff]
    %v1669 = vld [vmem:[%s7 + $0x18] sm:$0xff]
    %v1670 = vld [vmem:[%s8] sm:$0xff]
    %v1671 = vld [vmem:[%s8 + $0x8] sm:$0xff]
    %v1672 = vld [vmem:[%s8 + $0x10] sm:$0xff]
    %v1673 = vld [vmem:[%s8 + $0x18] sm:$0xff]
    %v1674 = vsel %vm193, %v1661, 0
    %1676 = vmatprep.subr.mxu0 0.0
    %1677 = vmatpush1.msra.mxu0 %v1670
    %1678 = vmatprep.subr.mxu0 0.0
    %1679 = vmatpush1.msra.mxu0 %v1671
    %1680 = vmatprep.subr.mxu0 0.0
    %1681 = vmatpush1.msra.mxu0 %v1672
    %1682 = vmatprep.subr.mxu0 0.0
    %1683 = vmatpush1.msra.mxu0 %v1673
    %1684 = vmatprep.subr.mxu0 0.0
    %1685 = vmatpush1.msra.mxu0 0.0
    %1686 = vmatprep.subr.mxu0 0.0
    %1687 = vmatpush1.msra.mxu0 0.0
    %1688 = vmatprep.subr.mxu0 0.0
    %1689 = vmatpush1.msra.mxu0 0.0
    %1690 = vmatprep.subr.mxu0 0.0
    %1691 = vmatpush1.msra.mxu0 0.0
    %1692 = vmatprep.subr.mxu0 0.0
    %1693 = vmatpush1.msra.mxu0 0.0
    %1694 = vmatprep.subr.mxu0 0.0
    %1695 = vmatpush1.msra.mxu0 0.0
    %1696 = vmatprep.subr.mxu0 0.0
    %1697 = vmatpush1.msra.mxu0 0.0
    %1698 = vmatprep.subr.mxu0 0.0
    %1699 = vmatpush1.msra.mxu0 0.0
    %1700 = vmatprep.subr.mxu0 0.0
    %1701 = vmatpush1.msra.mxu0 0.0
    %1702 = vmatprep.subr.mxu0 0.0
    %1703 = vmatpush1.msra.mxu0 0.0
    %1704 = vmatprep.subr.mxu0 0.0
    %1705 = vmatpush1.msra.mxu0 0.0
    %1706 = vmatprep.subr.mxu0 0.0
    %1707 = vmatpush1.msra.mxu0 0.0
    %1708 = vmatprep.subr.mxu0 0.0
    %1709 = vmatpush1.msra.mxu0 0.0
    %1710 = vmatprep.subr.mxu0 0.0
    %1711 = vmatpush1.msra.mxu0 0.0
    %1712 = vmatprep.subr.mxu0 0.0
    %1713 = vmatpush1.msra.mxu0 0.0
    %1714 = vmatprep.subr.mxu0 0.0
    %1715 = vmatpush1.msra.mxu0 0.0
    %1716 = vmatprep.subr.mxu0 0.0
    %1717 = vmatpush1.msra.mxu0 0.0
    %1718 = vmatprep.subr.mxu0 0.0
    %1719 = vmatpush1.msra.mxu0 0.0
    %1720 = vmatprep.subr.mxu0 0.0
    %1721 = vmatpush1.msra.mxu0 0.0
    %1722 = vmatprep.subr.mxu0 0.0
    %1723 = vmatpush1.msra.mxu0 0.0
    %1724 = vmatprep.subr.mxu0 0.0
    %1725 = vmatpush1.msra.mxu0 0.0
    %1726 = vmatprep.subr.mxu0 0.0
    %1727 = vmatpush1.msra.mxu0 0.0
    %1728 = vmatprep.subr.mxu0 0.0
    %1729 = vmatpush1.msra.mxu0 0.0
    %1730 = vmatprep.subr.mxu0 0.0
    %1731 = vmatpush1.msra.mxu0 0.0
    %1732 = vmatprep.subr.mxu0 0.0
    %1733 = vmatpush1.msra.mxu0 0.0
    %1734 = vmatprep.subr.mxu0 0.0
    %1735 = vmatpush1.msra.mxu0 0.0
    %1736 = vmatprep.subr.mxu0 0.0
    %1737 = vmatpush1.msra.mxu0 0.0
    %1738 = vmatprep.subr.mxu0 0.0
    %1739 = vmatpush1.msra.mxu0 0.0
    %1740 = vmatprep.mubr.f32.mxu0 0.0
    %1741 = vmatmul.mubr.f32.gmra.mrb[0].mxu0 %v1674
    %v1742 = vpop.f32.mrb[0].mxu0
    %v1743 = vadd.f32 0.0, %v1742
    %v1744 = vpop.f32.mrb[0].mxu0
    %1745 = vdwg.mxu0
    %v1747 = vsel %vm193, %v1665, 0
    %1749 = vmatprep.subr.mxu0 0.0
    %1750 = vmatpush1.msra.mxu0 %v1666
    %1751 = vmatprep.subr.mxu0 0.0
    %1752 = vmatpush1.msra.mxu0 %v1667
    %1753 = vmatprep.subr.mxu0 0.0
    %1754 = vmatpush1.msra.mxu0 %v1668
    %1755 = vmatprep.subr.mxu0 0.0
    %1756 = vmatpush1.msra.mxu0 %v1669
    %1757 = vmatprep.subr.mxu0 0.0
    %1758 = vmatpush1.msra.mxu0 0.0
    %1759 = vmatprep.subr.mxu0 0.0
    %1760 = vmatpush1.msra.mxu0 0.0
    %1761 = vmatprep.subr.mxu0 0.0
    %1762 = vmatpush1.msra.mxu0 0.0
    %1763 = vmatprep.subr.mxu0 0.0
    %1764 = vmatpush1.msra.mxu0 0.0
    %1765 = vmatprep.subr.mxu0 0.0
    %1766 = vmatpush1.msra.mxu0 0.0
    %1767 = vmatprep.subr.mxu0 0.0
    %1768 = vmatpush1.msra.mxu0 0.0
    %1769 = vmatprep.subr.mxu0 0.0
    %1770 = vmatpush1.msra.mxu0 0.0
    %1771 = vmatprep.subr.mxu0 0.0
    %1772 = vmatpush1.msra.mxu0 0.0
    %1773 = vmatprep.subr.mxu0 0.0
    %1774 = vmatpush1.msra.mxu0 0.0
    %1775 = vmatprep.subr.mxu0 0.0
    %1776 = vmatpush1.msra.mxu0 0.0
    %1777 = vmatprep.subr.mxu0 0.0
    %1778 = vmatpush1.msra.mxu0 0.0
    %1779 = vmatprep.subr.mxu0 0.0
    %1780 = vmatpush1.msra.mxu0 0.0
    %1781 = vmatprep.subr.mxu0 0.0
    %1782 = vmatpush1.msra.mxu0 0.0
    %1783 = vmatprep.subr.mxu0 0.0
    %1784 = vmatpush1.msra.mxu0 0.0
    %1785 = vmatprep.subr.mxu0 0.0
    %1786 = vmatpush1.msra.mxu0 0.0
    %1787 = vmatprep.subr.mxu0 0.0
    %1788 = vmatpush1.msra.mxu0 0.0
    %1789 = vmatprep.subr.mxu0 0.0
    %1790 = vmatpush1.msra.mxu0 0.0
    %1791 = vmatprep.subr.mxu0 0.0
    %1792 = vmatpush1.msra.mxu0 0.0
    %1793 = vmatprep.subr.mxu0 0.0
    %1794 = vmatpush1.msra.mxu0 0.0
    %1795 = vmatprep.subr.mxu0 0.0
    %1796 = vmatpush1.msra.mxu0 0.0
    %1797 = vmatprep.subr.mxu0 0.0
    %1798 = vmatpush1.msra.mxu0 0.0
    %1799 = vmatprep.subr.mxu0 0.0
    %1800 = vmatpush1.msra.mxu0 0.0
    %1801 = vmatprep.subr.mxu0 0.0
    %1802 = vmatpush1.msra.mxu0 0.0
    %1803 = vmatprep.subr.mxu0 0.0
    %1804 = vmatpush1.msra.mxu0 0.0
    %1805 = vmatprep.subr.mxu0 0.0
    %1806 = vmatpush1.msra.mxu0 0.0
    %1807 = vmatprep.subr.mxu0 0.0
    %1808 = vmatpush1.msra.mxu0 0.0
    %1809 = vmatprep.subr.mxu0 0.0
    %1810 = vmatpush1.msra.mxu0 0.0
    %1811 = vmatprep.subr.mxu0 0.0
    %1812 = vmatpush1.msra.mxu0 0.0
    %1813 = vmatprep.mubr.f32.mxu0 0.0
    %1814 = vmatmul.mubr.f32.gmra.mrb[0].mxu0 %v1747
    %v1815 = vpop.f32.mrb[0].mxu0
    %v1816 = vadd.f32 %v1743, %v1815
    %v1817 = vpop.f32.mrb[0].mxu0
    %1818 = vdwg.mxu0
    %v1819 = vld [vmem:[%s9] sm:$0x1]
    %v1821 = vlaneseq
    %v1822 = vshrl.u32 %v1821, 7
    %v1823 = vsub.s32 0, %v1822
    %v1824 = vrot.slane %v1819, %v1823
    %v1826 = vadd.f32 %v1816, %v1824
    %vm1827 = vcmask 195584
    %1828 = vst.msk [vmem:[%s11] sm:$0xff] %vm1827, %v1826
    // Predicated region
    $region42: #{recurrent_sr_forward.1} parent=1 // pred_check
      _
    $region43: #{recurrent_sr_forward.1} parent=1 // pred_check_branch
      %1830 = sbr.rel (0) target = $region45
    $region44: #{recurrent_sr_forward.1} parent=1 // pred_region
      %s1832 = ssub.s32 1024, 1024
      %1833 = vsyncadd [#allocation4], %s1832
      %s1834 = sshll.u32 [#allocation3], 4
      %s1835 = int_to_ptr.vmem [resolvable:$true] %s1834
      %1840 = dma.vmem_to_hbm [thread:$0]  %s1835, 1024, %s10, [#allocation4], 128, 128, 8
    $region45: #{recurrent_sr_forward.1} parent=1 // pred_fallthru
      _
    // Predicated region
    $region46: #{recurrent_sr_forward.1} parent=1 // pred_check
      _
    $region47: #{recurrent_sr_forward.1} parent=1 // pred_check_branch
      %1842 = sbr.rel (0) target = $region49
    $region48: #{recurrent_sr_forward.1} parent=1 // pred_region
      _
    $region49: #{recurrent_sr_forward.1} parent=1 // pred_fallthru
      _
    // Predicated region
    $region50: #{recurrent_sr_forward.1} parent=1 // pred_check
      _
    $region51: #{recurrent_sr_forward.1} parent=1 // pred_check_branch
      %1844 = sbr.rel (0) target = $region53
    $region52: #{recurrent_sr_forward.1} parent=1 // pred_region
      %1845 = dma.done [#allocation4], 1024
    $region53: #{recurrent_sr_forward.1} parent=1 // pred_fallthru
      _
    // Predicated region
    $region54: #{recurrent_sr_forward.1} parent=1 // pred_check
      _
    $region55: #{recurrent_sr_forward.1} parent=1 // pred_check_branch
      %1847 = sbr.rel (0) target = $region57
    $region56: #{recurrent_sr_forward.1} parent=1 // pred_region
      _
    $region57: #{recurrent_sr_forward.1} parent=1 // pred_fallthru
      _
    %1848 = vsyncpa [#allocation4], 1

</llo_original>
